<compile_context>
chip_gen: v6e
topology: v6e:2x2x1
jax: 0.10.0
libtpu: 0.0.40
codegen_flags: <defaults>
</compile_context>

<pallas_src>
import functools
import math

import numpy as np
import jax
import jax.numpy as jnp
from jax.experimental import pallas as pl
from jax.experimental.pallas import tpu as pltpu


# ----------------------------------------------------------------------------
# Positional embedding (identical math to the reference position_embed)
# ----------------------------------------------------------------------------
def position_embed(max_seq_len, d_model):
    pos = np.arange(max_seq_len, dtype=np.float64)[:, None]              # (L, 1)
    ang = pos / 10000.0 ** (2.0 * np.arange(d_model // 2) / d_model)      # (L, D/2)
    pos_emd = np.concatenate([np.cos(ang), np.sin(ang)], axis=1)          # (L, D)
    return jnp.asarray(pos_emd, dtype=jnp.float32)


# ----------------------------------------------------------------------------
# In-kernel helpers
# ----------------------------------------------------------------------------
def _laynorm(y, a, b, eps):
    # Reference Laynorm: torch.std => unbiased (ddof=1); eps added to std.
    # Two-pass stats + exact division for numerical parity with the reference.
    n = y.shape[-1]
    mean = jnp.mean(y, axis=-1, keepdims=True)
    d = y - mean
    var = jnp.sum(d * d, axis=-1, keepdims=True) * (1.0 / (n - 1))
    std = jnp.sqrt(var)
    return a * (d / (std + eps)) + b


# ----------------------------------------------------------------------------
# Per-(batch-block, layer) kernel.  Grid = (batch_blocks, num_layers).
# Activation is carried across the layer axis in a persistent VMEM scratch.
# ----------------------------------------------------------------------------
def transformer_layers_kernel(x_ref, wq_ref, bq_ref,
                              ln1a_ref, ln1b_ref,
                              w1_ref, b1_ref, w2_ref, b2_ref,
                              ln2a_ref, ln2b_ref,
                              wd_ref, bd_ref,
                              o_ref, xs_ref, *,
                              num_head, seq, eps):
    rows, d_model = xs_ref.shape          # rows = batch_block * seq
    H = num_head
    dh = d_model // H
    bb = rows // seq
    scale = 1.0 / math.sqrt(dh)
    mm = jnp.bfloat16                     # MXU operand dtype (f32 accumulation)

    layer = pl.program_id(1)
    n_layers = pl.num_programs(1)

    # ---- initialize the carried activation at the first layer ----
    @pl.when(layer == 0)
    def _init():
        xs_ref[...] = x_ref[...]

    x = xs_ref[...]                                                   # (rows, D) f32

    # ---- multi-head self-attention (Q = K = V through shared Wq; no Wo) ----
    # One dense MXU matmul for the projection; heads are split afterwards.
    q = (jnp.dot(x.astype(mm), wq_ref[0],
                 preferred_element_type=jnp.float32) + bq_ref[0])      # (rows, D) f32
    qh = jnp.stack([q[:, h * dh:(h + 1) * dh] for h in range(H)],
                   axis=0)                                             # (H, rows, dh)
    qh = qh.reshape(H * bb, seq, dh).astype(mm)                        # (H*bb, S, dh)

    s = jnp.einsum('nqd,nkd->nqk', qh, qh,
                   preferred_element_type=jnp.float32) * scale         # (H*bb, S, S)
    s = s - jnp.max(s, axis=-1, keepdims=True)
    e = jnp.exp(s)
    attw = e * pl.reciprocal(jnp.sum(e, axis=-1, keepdims=True), approx=True)
    ctx = jnp.einsum('nqk,nkd->nqd', attw.astype(mm), qh,
                     preferred_element_type=jnp.float32)               # (H*bb, S, dh)

    # merge heads back to (rows, D)
    ctx = ctx.reshape(H, rows, dh)
    att = jnp.concatenate([ctx[h] for h in range(H)], axis=-1)         # (rows, D)

    x1 = _laynorm(x + att, ln1a_ref[0], ln1b_ref[0], eps)

    # ---- FFN ----
    h1 = jnp.dot(x1.astype(mm), w1_ref[0],
                 preferred_element_type=jnp.float32) + b1_ref[0]
    h1 = jnp.maximum(h1, 0.0)
    ffn = jnp.dot(h1.astype(mm), w2_ref[0],
                  preferred_element_type=jnp.float32) + b2_ref[0]

    x2 = _laynorm(x1 + ffn, ln2a_ref[0], ln2b_ref[0], eps)
    xs_ref[...] = x2

    # ---- final tag projection (lane-dense padded output) at the last layer ----
    @pl.when(layer == n_layers - 1)
    def _final():
        o_ref[...] = (jnp.dot(x2.astype(mm), wd_ref[...],
                              preferred_element_type=jnp.float32)
                      + bd_ref[...]).astype(o_ref.dtype)


# ----------------------------------------------------------------------------
# Wrapper: weight stacking + single pallas_call over a (batch, layer) grid
# ----------------------------------------------------------------------------
def transformer_ec_forward(params, tokens, pos_emd, num_head):
    B, S = tokens.shape
    D = params["embed"].shape[1]
    L = len(params["layers"])
    H = num_head
    num_tag = params["dense_w"].shape[1]
    tpad = ((num_tag + 127) // 128) * 128          # lane-dense padded tag dim
    mm = jnp.bfloat16

    # Plain-JAX glue: embedding gather + positional add, flatten to (B*S, D).
    x = jnp.take(params["embed"], tokens, axis=0) + pos_emd[:S][None, :, :]
    x = x.reshape(B * S, D).astype(jnp.float32)

    # Stack per-layer weights along a leading layer axis (indexed by the grid).
    def stack(key, dtype=jnp.float32):
        return jnp.stack([lyr[key] for lyr in params["layers"]], axis=0).astype(dtype)

    wq = stack("wq", mm)                    # (L, D, D)  bf16 (dense, no head pre-split)
    bq = stack("bq")                        # (L, 1, D)  f32
    ln1a, ln1b = stack("ln1a"), stack("ln1b")
    w1, b1 = stack("w1", mm), stack("b1")
    w2, b2 = stack("w2", mm), stack("b2")
    ln2a, ln2b = stack("ln2a"), stack("ln2b")

    # Final dense padded with zeros to a 128-multiple tag axis (unmasked stores).
    wd = jnp.zeros((D, tpad), mm).at[:, :num_tag].set(params["dense_w"].astype(mm))
    bd = jnp.zeros((1, tpad), jnp.float32).at[:, :num_tag].set(params["dense_b"])

    # One sequence per batch-block when the sublane constraint allows it: the
    # leading "parallel" axis then lets v7x's two TensorCores split batches.
    batch_block = 1 if (S % 8 == 0) else B
    rows_blk = batch_block * S
    nb = B // batch_block
    d_ffn = w1.shape[-1]

    # ---- VMEM budget computed from the actual resident blocks (double-buffered) ----
    def nbytes(shape, dt):
        return int(np.prod(shape)) * jnp.dtype(dt).itemsize

    blk_in = (nbytes((rows_blk, D), jnp.float32)
              + nbytes((D, D), mm) + 6 * nbytes((1, D), jnp.float32)
              + nbytes((D, d_ffn), mm) + nbytes((1, d_ffn), jnp.float32)
              + nbytes((d_ffn, D), mm)
              + nbytes((D, tpad), mm) + nbytes((1, tpad), jnp.float32))
    blk_out = nbytes((rows_blk, tpad), jnp.float32)
    scratch = nbytes((rows_blk, D), jnp.float32)
    interm = 4 * (H * batch_block * S * S          # attention scores / weights
                  + H * batch_block * S * (D // H)  # per-head context
                  + rows_blk * d_ffn                # FFN hidden
                  + 4 * rows_blk * D)               # residual/LN temporaries
    needed = 2 * (blk_in + blk_out) + scratch + interm + (8 << 20)
    try:
        vmem_cap = pltpu.get_tpu_info().vmem_capacity_bytes
    except Exception:
        vmem_cap = 64 * 1024 * 1024               # conservative (v7x per-TC VMEM)
    vmem_limit = int(min(max(needed, 32 << 20), int(vmem_cap * 0.85)))

    def wspec(shp):
        # Per-layer weight: block (1, *shp) indexed by the layer grid axis.
        return pl.BlockSpec((1,) + shp, lambda b, l: (l,) + (0,) * len(shp))

    grid_spec = pltpu.PrefetchScalarGridSpec(
        num_scalar_prefetch=0,
        grid=(nb, L),
        in_specs=[
            pl.BlockSpec((rows_blk, D), lambda b, l: (b, 0)),     # x (read at l==0)
            wspec((D, D)),                                        # wq
            wspec((1, D)),                                        # bq
            wspec((1, D)), wspec((1, D)),                         # ln1a, ln1b
            wspec((D, d_ffn)), wspec((1, d_ffn)),                 # w1, b1
            wspec((d_ffn, D)), wspec((1, D)),                     # w2, b2
            wspec((1, D)), wspec((1, D)),                         # ln2a, ln2b
            pl.BlockSpec((D, tpad), lambda b, l: (0, 0)),         # wd (resident)
            pl.BlockSpec((1, tpad), lambda b, l: (0, 0)),         # bd (resident)
        ],
        out_specs=pl.BlockSpec((rows_blk, tpad), lambda b, l: (b, 0)),
        scratch_shapes=[pltpu.VMEM((rows_blk, D), jnp.float32)],  # carried activation
    )

    kern = functools.partial(transformer_layers_kernel,
                             num_head=H, seq=S, eps=1e-6)

    out = pl.pallas_call(
        kern,
        out_shape=jax.ShapeDtypeStruct((B * S, tpad), jnp.float32),
        grid_spec=grid_spec,
        compiler_params=pltpu.CompilerParams(
            dimension_semantics=("parallel", "arbitrary"),
            vmem_limit_bytes=vmem_limit),
    )(x, wq, bq, ln1a, ln1b, w1, b1, w2, b2, ln2a, ln2b, wd, bd)

    return out.reshape(B, S, tpad)[:, :, :num_tag]


# ----------------------------------------------------------------------------
# Parameter construction
# ----------------------------------------------------------------------------
def init_params(key, *, num_ec_layer, d_model, d_ffn, num_tag, word_size, emd_size):
    keys = jax.random.split(key, 3 + 8 * num_ec_layer)
    it = iter(keys)
    params = {
        "embed": jax.random.normal(next(it), (word_size, emd_size), jnp.float32) * 0.1,
        "layers": [],
        "dense_w": jax.random.normal(next(it), (d_model, num_tag), jnp.float32) * 0.1,
        "dense_b": jax.random.normal(next(it), (1, num_tag), jnp.float32) * 0.1,
    }
    for _ in range(num_ec_layer):
        layer = {
            "wq": jax.random.normal(next(it), (d_model, d_model), jnp.float32) * 0.1,
            "bq": jax.random.normal(next(it), (1, d_model), jnp.float32) * 0.1,
            "ln1a": jax.random.uniform(next(it), (1, d_model), jnp.float32),
            "ln1b": jnp.zeros((1, d_model), jnp.float32),
            "w1": jax.random.normal(next(it), (d_model, d_ffn), jnp.float32) * 0.1,
            "b1": jax.random.normal(next(it), (1, d_ffn), jnp.float32) * 0.1,
            "w2": jax.random.normal(next(it), (d_ffn, d_model), jnp.float32) * 0.1,
            "b2": jax.random.normal(next(it), (1, d_model), jnp.float32) * 0.1,
            "ln2a": jax.random.uniform(next(it), (1, d_model), jnp.float32),
            "ln2b": jnp.zeros((1, d_model), jnp.float32),
        }
        params["layers"].append(layer)
    return params


# ----------------------------------------------------------------------------
# Demo
# ----------------------------------------------------------------------------
if __name__ == "__main__":
    # Small config consistent with the module (emd_size must equal d_model).
    max_seq_len = 16
    num_ec_layer = 2
    d_model = 32
    num_head = 4
    d_ffn = 64
    num_tag = 8
    word_size = 50
    emd_size = d_model
    batch, seq = 2, 8

    key = jax.random.PRNGKey(0)
    k_tok, k_par = jax.random.split(key)

    tokens = jax.random.randint(k_tok, (batch, seq), 0, word_size, dtype=jnp.int32)
    params = init_params(k_par, num_ec_layer=num_ec_layer, d_model=d_model,
                         d_ffn=d_ffn, num_tag=num_tag, word_size=word_size,
                         emd_size=emd_size)
    pos_emd = position_embed(max_seq_len, d_model)

    fwd = jax.jit(transformer_ec_forward, static_argnums=(3,))
    logits = fwd(params, tokens, pos_emd, num_head)
    logits = jax.block_until_ready(logits)

    assert logits.shape == (batch, seq, num_tag)
    assert bool(jnp.all(jnp.isfinite(logits)))
    print("KERNEL_OK")
</pallas_src>

<mosaic_0001>
module attributes {stable_mosaic.version = 11 : i64} {
  func.func @transformer_layers_kernel(%arg0: i32, %arg1: i32, %arg2: memref<8x32xf32, #tpu.memory_space<vmem>>, %arg3: memref<1x32x32xbf16, #tpu.memory_space<vmem>>, %arg4: memref<1x1x32xf32, #tpu.memory_space<vmem>>, %arg5: memref<1x1x32xf32, #tpu.memory_space<vmem>>, %arg6: memref<1x1x32xf32, #tpu.memory_space<vmem>>, %arg7: memref<1x32x64xbf16, #tpu.memory_space<vmem>>, %arg8: memref<1x1x64xf32, #tpu.memory_space<vmem>>, %arg9: memref<1x64x32xbf16, #tpu.memory_space<vmem>>, %arg10: memref<1x1x32xf32, #tpu.memory_space<vmem>>, %arg11: memref<1x1x32xf32, #tpu.memory_space<vmem>>, %arg12: memref<1x1x32xf32, #tpu.memory_space<vmem>>, %arg13: memref<32x128xbf16, #tpu.memory_space<vmem>>, %arg14: memref<1x128xf32, #tpu.memory_space<vmem>>, %arg15: memref<8x128xf32, #tpu.memory_space<vmem>>, %arg16: memref<8x32xf32, #tpu.memory_space<vmem>>) attributes {dimension_semantics = [#tpu.dimension_semantics<parallel>, #tpu.dimension_semantics<arbitrary>], iteration_bounds = array<i64: 2, 2>, scalar_prefetch = 0 : i64, scratch_operands = 1 : i64, tpu.core_type = #tpu.core_type<tc>, window_params = [{transform_indices = @transform_0, window_bounds = array<i64: 8, 32>}, {transform_indices = @transform_1, window_bounds = array<i64: 1, 32, 32>}, {transform_indices = @transform_2, window_bounds = array<i64: 1, 1, 32>}, {transform_indices = @transform_3, window_bounds = array<i64: 1, 1, 32>}, {transform_indices = @transform_4, window_bounds = array<i64: 1, 1, 32>}, {transform_indices = @transform_5, window_bounds = array<i64: 1, 32, 64>}, {transform_indices = @transform_6, window_bounds = array<i64: 1, 1, 64>}, {transform_indices = @transform_7, window_bounds = array<i64: 1, 64, 32>}, {transform_indices = @transform_8, window_bounds = array<i64: 1, 1, 32>}, {transform_indices = @transform_9, window_bounds = array<i64: 1, 1, 32>}, {transform_indices = @transform_10, window_bounds = array<i64: 1, 1, 32>}, {pipeline_mode = #tpu.pipeline_mode<synchronous>, transform_indices = @transform_11, window_bounds = array<i64: 32, 128>}, {pipeline_mode = #tpu.pipeline_mode<synchronous>, transform_indices = @transform_12, window_bounds = array<i64: 1, 128>}, {transform_indices = @transform_13, window_bounds = array<i64: 8, 128>}]} {
    %c0_i32 = arith.constant 0 : i32
    %0 = arith.cmpi eq, %arg1, %c0_i32 : i32
    %1 = arith.extui %0 : i1 to i32
    %c0_i32_0 = arith.constant 0 : i32
    %2 = arith.cmpi ne, %1, %c0_i32_0 : i32
    scf.if %2 {
      %c0_53 = arith.constant 0 : index
      %c0_54 = arith.constant 0 : index
      %118 = vector.load %arg2[%c0_53, %c0_54] : memref<8x32xf32, #tpu.memory_space<vmem>>, vector<8x32xf32>
      %c0_55 = arith.constant 0 : index
      %c0_56 = arith.constant 0 : index
      %119 = vector.load %arg16[%c0_55, %c0_56] : memref<8x32xf32, #tpu.memory_space<vmem>>, vector<8x32xf32>
      tpu.vector_store %arg16[%c0_55, %c0_56], %118 {strides = array<i32>} : memref<8x32xf32, #tpu.memory_space<vmem>>, vector<8x32xf32>,
    } else {
    }
    %c0 = arith.constant 0 : index
    %c0_1 = arith.constant 0 : index
    %3 = vector.load %arg16[%c0, %c0_1] : memref<8x32xf32, #tpu.memory_space<vmem>>, vector<8x32xf32>
    %4 = arith.truncf %3 : vector<8x32xf32> to vector<8x32xbf16>
    %c0_2 = arith.constant 0 : index
    %c0_3 = arith.constant 0 : index
    %c0_4 = arith.constant 0 : index
    %5 = vector.load %arg3[%c0_2, %c0_3, %c0_4] : memref<1x32x32xbf16, #tpu.memory_space<vmem>>, vector<1x32x32xbf16>
    %6 = vector.shape_cast %5 : vector<1x32x32xbf16> to vector<32x32xbf16>
    %cst = arith.constant dense<0.000000e+00> : vector<8x32xf32>
    %7 = tpu.matmul %4, %6, %cst {dimension_numbers = #tpu.dot_dimension_numbers<[1], [0], [0], [1], [0, 0, 1, 1], [], []>} : vector<8x32xbf16>, vector<32x32xbf16>, vector<8x32xf32> -> vector<8x32xf32>
    %c0_5 = arith.constant 0 : index
    %c0_6 = arith.constant 0 : index
    %c0_7 = arith.constant 0 : index
    %8 = vector.load %arg4[%c0_5, %c0_6, %c0_7] : memref<1x1x32xf32, #tpu.memory_space<vmem>>, vector<1x1x32xf32>
    %9 = vector.shape_cast %8 : vector<1x1x32xf32> to vector<1x32xf32>
    %10 = vector.broadcast %9 : vector<1x32xf32> to vector<8x32xf32>
    %11 = arith.addf %7, %10 : vector<8x32xf32>
    %12 = vector.extract_strided_slice %11 {offsets = [0, 0], sizes = [8, 8], strides = [1, 1]} : vector<8x32xf32> to vector<8x8xf32>
    %13 = vector.extract_strided_slice %11 {offsets = [0, 8], sizes = [8, 8], strides = [1, 1]} : vector<8x32xf32> to vector<8x8xf32>
    %14 = vector.extract_strided_slice %11 {offsets = [0, 16], sizes = [8, 8], strides = [1, 1]} : vector<8x32xf32> to vector<8x8xf32>
    %15 = vector.extract_strided_slice %11 {offsets = [0, 24], sizes = [8, 8], strides = [1, 1]} : vector<8x32xf32> to vector<8x8xf32>
    %16 = vector.shape_cast %12 : vector<8x8xf32> to vector<1x8x8xf32>
    %17 = vector.shape_cast %13 : vector<8x8xf32> to vector<1x8x8xf32>
    %18 = vector.shape_cast %14 : vector<8x8xf32> to vector<1x8x8xf32>
    %19 = vector.shape_cast %15 : vector<8x8xf32> to vector<1x8x8xf32>
    %20 = tpu.concatenate %16, %17, %18, %19 in 0 : vector<1x8x8xf32>, vector<1x8x8xf32>, vector<1x8x8xf32>, vector<1x8x8xf32> -> vector<4x8x8xf32>
    %21 = arith.truncf %20 : vector<4x8x8xf32> to vector<4x8x8xbf16>
    "tpu.trace_start"() <{level = 10 : i32, message = "nqd,nkd->nqk"}> : () -> ()
    %cst_8 = arith.constant dense<0.000000e+00> : vector<4x8x8xf32>
    %22 = tpu.matmul %21, %21, %cst_8 {dimension_numbers = #tpu.dot_dimension_numbers<[2], [2], [1], [1], [0, 0, 0, 1, 1, 1], [0], [0]>} : vector<4x8x8xbf16>, vector<4x8x8xbf16>, vector<4x8x8xf32> -> vector<4x8x8xf32>
    "tpu.trace_stop"() : () -> ()
    %cst_9 = arith.constant 0.353553385 : f32
    %23 = vector.broadcast %cst_9 : f32 to vector<4x8x8xf32>
    %24 = arith.mulf %22, %23 : vector<4x8x8xf32>
    %cst_10 = arith.constant dense<0xFF800000> : vector<4x8xf32>
    %25 = vector.multi_reduction <maximumf>, %24, %cst_10 [2] : vector<4x8x8xf32> to vector<4x8xf32>
    %26 = vector.shape_cast %25 : vector<4x8xf32> to vector<4x8x1xf32>
    %27 = vector.broadcast %26 : vector<4x8x1xf32> to vector<4x8x8xf32>
    %28 = arith.subf %24, %27 : vector<4x8x8xf32>
    %29 = math.exp %28 : vector<4x8x8xf32>
    %cst_11 = arith.constant dense<0.000000e+00> : vector<4x8xf32>
    %30 = vector.multi_reduction <add>, %29, %cst_11 [2] : vector<4x8x8xf32> to vector<4x8xf32>
    %31 = vector.shape_cast %30 : vector<4x8xf32> to vector<4x8x1xf32>
    %32 = tpu.reciprocal %31 {approx = true} : vector<4x8x1xf32> -> vector<4x8x1xf32>
    %33 = vector.broadcast %32 : vector<4x8x1xf32> to vector<4x8x8xf32>
    %34 = arith.mulf %29, %33 : vector<4x8x8xf32>
    %35 = arith.truncf %34 : vector<4x8x8xf32> to vector<4x8x8xbf16>
    "tpu.trace_start"() <{level = 10 : i32, message = "nqk,nkd->nqd"}> : () -> ()
    %cst_12 = arith.constant dense<0.000000e+00> : vector<4x8x8xf32>
    %36 = tpu.matmul %35, %21, %cst_12 {dimension_numbers = #tpu.dot_dimension_numbers<[2], [1], [1], [2], [0, 0, 0, 1, 1, 2], [0], [0]>} : vector<4x8x8xbf16>, vector<4x8x8xbf16>, vector<4x8x8xf32> -> vector<4x8x8xf32>
    "tpu.trace_stop"() : () -> ()
    %37 = vector.extract_strided_slice %36 {offsets = [0, 0, 0], sizes = [1, 8, 8], strides = [1, 1, 1]} : vector<4x8x8xf32> to vector<1x8x8xf32>
    %38 = vector.shape_cast %37 : vector<1x8x8xf32> to vector<8x8xf32>
    %39 = vector.extract_strided_slice %36 {offsets = [1, 0, 0], sizes = [1, 8, 8], strides = [1, 1, 1]} : vector<4x8x8xf32> to vector<1x8x8xf32>
    %40 = vector.shape_cast %39 : vector<1x8x8xf32> to vector<8x8xf32>
    %41 = vector.extract_strided_slice %36 {offsets = [2, 0, 0], sizes = [1, 8, 8], strides = [1, 1, 1]} : vector<4x8x8xf32> to vector<1x8x8xf32>
    %42 = vector.shape_cast %41 : vector<1x8x8xf32> to vector<8x8xf32>
    %43 = vector.extract_strided_slice %36 {offsets = [3, 0, 0], sizes = [1, 8, 8], strides = [1, 1, 1]} : vector<4x8x8xf32> to vector<1x8x8xf32>
    %44 = vector.shape_cast %43 : vector<1x8x8xf32> to vector<8x8xf32>
    %45 = tpu.concatenate %38, %40, %42, %44 in 1 : vector<8x8xf32>, vector<8x8xf32>, vector<8x8xf32>, vector<8x8xf32> -> vector<8x32xf32>
    %46 = arith.addf %3, %45 : vector<8x32xf32>
    %c0_13 = arith.constant 0 : index
    %c0_14 = arith.constant 0 : index
    %c0_15 = arith.constant 0 : index
    %47 = vector.load %arg5[%c0_13, %c0_14, %c0_15] : memref<1x1x32xf32, #tpu.memory_space<vmem>>, vector<1x1x32xf32>
    %48 = vector.shape_cast %47 : vector<1x1x32xf32> to vector<1x32xf32>
    %c0_16 = arith.constant 0 : index
    %c0_17 = arith.constant 0 : index
    %c0_18 = arith.constant 0 : index
    %49 = vector.load %arg6[%c0_16, %c0_17, %c0_18] : memref<1x1x32xf32, #tpu.memory_space<vmem>>, vector<1x1x32xf32>
    %50 = vector.shape_cast %49 : vector<1x1x32xf32> to vector<1x32xf32>
    %cst_19 = arith.constant dense<0.000000e+00> : vector<8xf32>
    %51 = vector.multi_reduction <add>, %46, %cst_19 [1] : vector<8x32xf32> to vector<8xf32>
    %52 = vector.shape_cast %51 : vector<8xf32> to vector<8x1xf32>
    %cst_20 = arith.constant 3.200000e+01 : f32
    %53 = vector.broadcast %cst_20 : f32 to vector<8x1xf32>
    %54 = arith.divf %52, %53 : vector<8x1xf32>
    %55 = vector.broadcast %54 : vector<8x1xf32> to vector<8x32xf32>
    %56 = arith.subf %46, %55 : vector<8x32xf32>
    %57 = arith.mulf %56, %56 : vector<8x32xf32>
    %cst_21 = arith.constant dense<0.000000e+00> : vector<8xf32>
    %58 = vector.multi_reduction <add>, %57, %cst_21 [1] : vector<8x32xf32> to vector<8xf32>
    %59 = vector.shape_cast %58 : vector<8xf32> to vector<8x1xf32>
    %cst_22 = arith.constant 0.0322580636 : f32
    %60 = vector.broadcast %cst_22 : f32 to vector<8x1xf32>
    %61 = arith.mulf %59, %60 : vector<8x1xf32>
    %62 = math.sqrt %61 : vector<8x1xf32>
    %cst_23 = arith.constant 9.99999997E-7 : f32
    %63 = vector.broadcast %cst_23 : f32 to vector<8x1xf32>
    %64 = arith.addf %62, %63 : vector<8x1xf32>
    %65 = vector.broadcast %64 : vector<8x1xf32> to vector<8x32xf32>
    %66 = arith.divf %56, %65 : vector<8x32xf32>
    %67 = vector.broadcast %48 : vector<1x32xf32> to vector<8x32xf32>
    %68 = arith.mulf %67, %66 : vector<8x32xf32>
    %69 = vector.broadcast %50 : vector<1x32xf32> to vector<8x32xf32>
    %70 = arith.addf %68, %69 : vector<8x32xf32>
    %71 = arith.truncf %70 : vector<8x32xf32> to vector<8x32xbf16>
    %c0_24 = arith.constant 0 : index
    %c0_25 = arith.constant 0 : index
    %c0_26 = arith.constant 0 : index
    %72 = vector.load %arg7[%c0_24, %c0_25, %c0_26] : memref<1x32x64xbf16, #tpu.memory_space<vmem>>, vector<1x32x64xbf16>
    %73 = vector.shape_cast %72 : vector<1x32x64xbf16> to vector<32x64xbf16>
    %cst_27 = arith.constant dense<0.000000e+00> : vector<8x64xf32>
    %74 = tpu.matmul %71, %73, %cst_27 {dimension_numbers = #tpu.dot_dimension_numbers<[1], [0], [0], [1], [0, 0, 1, 1], [], []>} : vector<8x32xbf16>, vector<32x64xbf16>, vector<8x64xf32> -> vector<8x64xf32>
    %c0_28 = arith.constant 0 : index
    %c0_29 = arith.constant 0 : index
    %c0_30 = arith.constant 0 : index
    %75 = vector.load %arg8[%c0_28, %c0_29, %c0_30] : memref<1x1x64xf32, #tpu.memory_space<vmem>>, vector<1x1x64xf32>
    %76 = vector.shape_cast %75 : vector<1x1x64xf32> to vector<1x64xf32>
    %77 = vector.broadcast %76 : vector<1x64xf32> to vector<8x64xf32>
    %78 = arith.addf %74, %77 : vector<8x64xf32>
    %cst_31 = arith.constant 0.000000e+00 : f32
    %79 = vector.broadcast %cst_31 : f32 to vector<8x64xf32>
    %80 = arith.maximumf %78, %79 : vector<8x64xf32>
    %81 = arith.truncf %80 : vector<8x64xf32> to vector<8x64xbf16>
    %c0_32 = arith.constant 0 : index
    %c0_33 = arith.constant 0 : index
    %c0_34 = arith.constant 0 : index
    %82 = vector.load %arg9[%c0_32, %c0_33, %c0_34] : memref<1x64x32xbf16, #tpu.memory_space<vmem>>, vector<1x64x32xbf16>
    %83 = vector.shape_cast %82 : vector<1x64x32xbf16> to vector<64x32xbf16>
    %cst_35 = arith.constant dense<0.000000e+00> : vector<8x32xf32>
    %84 = tpu.matmul %81, %83, %cst_35 {dimension_numbers = #tpu.dot_dimension_numbers<[1], [0], [0], [1], [0, 0, 1, 1], [], []>} : vector<8x64xbf16>, vector<64x32xbf16>, vector<8x32xf32> -> vector<8x32xf32>
    %c0_36 = arith.constant 0 : index
    %c0_37 = arith.constant 0 : index
    %c0_38 = arith.constant 0 : index
    %85 = vector.load %arg10[%c0_36, %c0_37, %c0_38] : memref<1x1x32xf32, #tpu.memory_space<vmem>>, vector<1x1x32xf32>
    %86 = vector.shape_cast %85 : vector<1x1x32xf32> to vector<1x32xf32>
    %87 = vector.broadcast %86 : vector<1x32xf32> to vector<8x32xf32>
    %88 = arith.addf %84, %87 : vector<8x32xf32>
    %89 = arith.addf %70, %88 : vector<8x32xf32>
    %c0_39 = arith.constant 0 : index
    %c0_40 = arith.constant 0 : index
    %c0_41 = arith.constant 0 : index
    %90 = vector.load %arg11[%c0_39, %c0_40, %c0_41] : memref<1x1x32xf32, #tpu.memory_space<vmem>>, vector<1x1x32xf32>
    %91 = vector.shape_cast %90 : vector<1x1x32xf32> to vector<1x32xf32>
    %c0_42 = arith.constant 0 : index
    %c0_43 = arith.constant 0 : index
    %c0_44 = arith.constant 0 : index
    %92 = vector.load %arg12[%c0_42, %c0_43, %c0_44] : memref<1x1x32xf32, #tpu.memory_space<vmem>>, vector<1x1x32xf32>
    %93 = vector.shape_cast %92 : vector<1x1x32xf32> to vector<1x32xf32>
    %cst_45 = arith.constant dense<0.000000e+00> : vector<8xf32>
    %94 = vector.multi_reduction <add>, %89, %cst_45 [1] : vector<8x32xf32> to vector<8xf32>
    %95 = vector.shape_cast %94 : vector<8xf32> to vector<8x1xf32>
    %cst_46 = arith.constant 3.200000e+01 : f32
    %96 = vector.broadcast %cst_46 : f32 to vector<8x1xf32>
    %97 = arith.divf %95, %96 : vector<8x1xf32>
    %98 = vector.broadcast %97 : vector<8x1xf32> to vector<8x32xf32>
    %99 = arith.subf %89, %98 : vector<8x32xf32>
    %100 = arith.mulf %99, %99 : vector<8x32xf32>
    %cst_47 = arith.constant dense<0.000000e+00> : vector<8xf32>
    %101 = vector.multi_reduction <add>, %100, %cst_47 [1] : vector<8x32xf32> to vector<8xf32>
    %102 = vector.shape_cast %101 : vector<8xf32> to vector<8x1xf32>
    %cst_48 = arith.constant 0.0322580636 : f32
    %103 = vector.broadcast %cst_48 : f32 to vector<8x1xf32>
    %104 = arith.mulf %102, %103 : vector<8x1xf32>
    %105 = math.sqrt %104 : vector<8x1xf32>
    %cst_49 = arith.constant 9.99999997E-7 : f32
    %106 = vector.broadcast %cst_49 : f32 to vector<8x1xf32>
    %107 = arith.addf %105, %106 : vector<8x1xf32>
    %108 = vector.broadcast %107 : vector<8x1xf32> to vector<8x32xf32>
    %109 = arith.divf %99, %108 : vector<8x32xf32>
    %110 = vector.broadcast %91 : vector<1x32xf32> to vector<8x32xf32>
    %111 = arith.mulf %110, %109 : vector<8x32xf32>
    %112 = vector.broadcast %93 : vector<1x32xf32> to vector<8x32xf32>
    %113 = arith.addf %111, %112 : vector<8x32xf32>
    %c0_50 = arith.constant 0 : index
    %c0_51 = arith.constant 0 : index
    %114 = vector.load %arg16[%c0_50, %c0_51] : memref<8x32xf32, #tpu.memory_space<vmem>>, vector<8x32xf32>
    tpu.vector_store %arg16[%c0_50, %c0_51], %113 {strides = array<i32>} : memref<8x32xf32, #tpu.memory_space<vmem>>, vector<8x32xf32>,
    %c1_i32 = arith.constant 1 : i32
    %115 = arith.cmpi eq, %arg1, %c1_i32 : i32
    %116 = arith.extui %115 : i1 to i32
    %c0_i32_52 = arith.constant 0 : i32
    %117 = arith.cmpi ne, %116, %c0_i32_52 : i32
    scf.if %117 {
      %118 = arith.truncf %113 : vector<8x32xf32> to vector<8x32xbf16>
      %c0_53 = arith.constant 0 : index
      %c0_54 = arith.constant 0 : index
      %119 = vector.load %arg13[%c0_53, %c0_54] : memref<32x128xbf16, #tpu.memory_space<vmem>>, vector<32x128xbf16>
      %cst_55 = arith.constant dense<0.000000e+00> : vector<8x128xf32>
      %120 = tpu.matmul %118, %119, %cst_55 {dimension_numbers = #tpu.dot_dimension_numbers<[1], [0], [0], [1], [0, 0, 1, 1], [], []>} : vector<8x32xbf16>, vector<32x128xbf16>, vector<8x128xf32> -> vector<8x128xf32>
      %c0_56 = arith.constant 0 : index
      %c0_57 = arith.constant 0 : index
      %121 = vector.load %arg14[%c0_56, %c0_57] : memref<1x128xf32, #tpu.memory_space<vmem>>, vector<1x128xf32>
      %122 = vector.broadcast %121 : vector<1x128xf32> to vector<8x128xf32>
      %123 = arith.addf %120, %122 : vector<8x128xf32>
      %c0_58 = arith.constant 0 : index
      %c0_59 = arith.constant 0 : index
      %124 = vector.load %arg15[%c0_58, %c0_59] : memref<8x128xf32, #tpu.memory_space<vmem>>, vector<8x128xf32>
      tpu.vector_store %arg15[%c0_58, %c0_59], %123 {strides = array<i32>} : memref<8x128xf32, #tpu.memory_space<vmem>>, vector<8x128xf32>,
    } else {
    }
    return
  }
  func.func @transform_0(%arg0: i32, %arg1: i32) -> (i32, i32) {
    %c0_i32 = arith.constant 0 : i32
    %c0_i32_0 = arith.constant 0 : i32
    return %arg0, %c0_i32 : i32, i32
  }
  func.func @transform_1(%arg0: i32, %arg1: i32) -> (i32, i32, i32) {
    %c0_i32 = arith.constant 0 : i32
    %c0_i32_0 = arith.constant 0 : i32
    %c0_i32_1 = arith.constant 0 : i32
    return %arg1, %c0_i32, %c0_i32_0 : i32, i32, i32
  }
  func.func @transform_2(%arg0: i32, %arg1: i32) -> (i32, i32, i32) {
    %c0_i32 = arith.constant 0 : i32
    %c0_i32_0 = arith.constant 0 : i32
    %c0_i32_1 = arith.constant 0 : i32
    return %arg1, %c0_i32, %c0_i32_0 : i32, i32, i32
  }
  func.func @transform_3(%arg0: i32, %arg1: i32) -> (i32, i32, i32) {
    %c0_i32 = arith.constant 0 : i32
    %c0_i32_0 = arith.constant 0 : i32
    %c0_i32_1 = arith.constant 0 : i32
    return %arg1, %c0_i32, %c0_i32_0 : i32, i32, i32
  }
  func.func @transform_4(%arg0: i32, %arg1: i32) -> (i32, i32, i32) {
    %c0_i32 = arith.constant 0 : i32
    %c0_i32_0 = arith.constant 0 : i32
    %c0_i32_1 = arith.constant 0 : i32
    return %arg1, %c0_i32, %c0_i32_0 : i32, i32, i32
  }
  func.func @transform_5(%arg0: i32, %arg1: i32) -> (i32, i32, i32) {
    %c0_i32 = arith.constant 0 : i32
    %c0_i32_0 = arith.constant 0 : i32
    %c0_i32_1 = arith.constant 0 : i32
    return %arg1, %c0_i32, %c0_i32_0 : i32, i32, i32
  }
  func.func @transform_6(%arg0: i32, %arg1: i32) -> (i32, i32, i32) {
    %c0_i32 = arith.constant 0 : i32
    %c0_i32_0 = arith.constant 0 : i32
    %c0_i32_1 = arith.constant 0 : i32
    return %arg1, %c0_i32, %c0_i32_0 : i32, i32, i32
  }
  func.func @transform_7(%arg0: i32, %arg1: i32) -> (i32, i32, i32) {
    %c0_i32 = arith.constant 0 : i32
    %c0_i32_0 = arith.constant 0 : i32
    %c0_i32_1 = arith.constant 0 : i32
    return %arg1, %c0_i32, %c0_i32_0 : i32, i32, i32
  }
  func.func @transform_8(%arg0: i32, %arg1: i32) -> (i32, i32, i32) {
    %c0_i32 = arith.constant 0 : i32
    %c0_i32_0 = arith.constant 0 : i32
    %c0_i32_1 = arith.constant 0 : i32
    return %arg1, %c0_i32, %c0_i32_0 : i32, i32, i32
  }
  func.func @transform_9(%arg0: i32, %arg1: i32) -> (i32, i32, i32) {
    %c0_i32 = arith.constant 0 : i32
    %c0_i32_0 = arith.constant 0 : i32
    %c0_i32_1 = arith.constant 0 : i32
    return %arg1, %c0_i32, %c0_i32_0 : i32, i32, i32
  }
  func.func @transform_10(%arg0: i32, %arg1: i32) -> (i32, i32, i32) {
    %c0_i32 = arith.constant 0 : i32
    %c0_i32_0 = arith.constant 0 : i32
    %c0_i32_1 = arith.constant 0 : i32
    return %arg1, %c0_i32, %c0_i32_0 : i32, i32, i32
  }
  func.func @transform_11(%arg0: i32, %arg1: i32) -> (i32, i32) {
    %c0_i32 = arith.constant 0 : i32
    %c0_i32_0 = arith.constant 0 : i32
    %c0_i32_1 = arith.constant 0 : i32
    return %c0_i32, %c0_i32_0 : i32, i32
  }
  func.func @transform_12(%arg0: i32, %arg1: i32) -> (i32, i32) {
    %c0_i32 = arith.constant 0 : i32
    %c0_i32_0 = arith.constant 0 : i32
    %c0_i32_1 = arith.constant 0 : i32
    return %c0_i32, %c0_i32_0 : i32, i32
  }
  func.func @transform_13(%arg0: i32, %arg1: i32) -> (i32, i32) {
    %c0_i32 = arith.constant 0 : i32
    %c0_i32_0 = arith.constant 0 : i32
    return %arg0, %c0_i32 : i32, i32
  }
}

</mosaic_0001>

<llo_original>
// kernel: transformer_ec_forward.1
$region0: #{transformer_ec_forward.1}
  #allocation0 [shape = 'u32[]', space=smem, size = 0x4, offset = 0x4, fixed_abs, tag = 'smem constant byte address 0x4 - core index']
  #allocation1 [shape = 'u32[144,128]{1,0:T(1,128)}', space=vmem, size = 0x12000, scoped, tag = 'internal scratch']
  #allocation2 [shape = 'f32[8,32]{1,0:T(8,128)}', space=vmem, size = 0x1000, scoped, tag = 'scratch operand']
  %s0 = inlined_call_operand.vmem [shape: f32[16,32], index: 0, kind: input, shape index: {}]
  %s1 = inlined_call_operand.vmem [shape: bf16[2,32,32], index: 1, kind: input, shape index: {}]
  %s2 = inlined_call_operand.vmem [shape: f32[2,1,32], index: 2, kind: input, shape index: {}]
  %s3 = inlined_call_operand.vmem [shape: f32[2,1,32], index: 3, kind: input, shape index: {}]
  %s4 = inlined_call_operand.vmem [shape: f32[2,1,32], index: 4, kind: input, shape index: {}]
  %s5 = inlined_call_operand.vmem [shape: bf16[2,32,64], index: 5, kind: input, shape index: {}]
  %s6 = inlined_call_operand.vmem [shape: f32[2,1,64], index: 6, kind: input, shape index: {}]
  %s7 = inlined_call_operand.vmem [shape: bf16[2,64,32], index: 7, kind: input, shape index: {}]
  %s8 = inlined_call_operand.vmem [shape: f32[2,1,32], index: 8, kind: input, shape index: {}]
  %s9 = inlined_call_operand.vmem [shape: f32[2,1,32], index: 9, kind: input, shape index: {}]
  %s10 = inlined_call_operand.vmem [shape: f32[2,1,32], index: 10, kind: input, shape index: {}]
  %s11 = inlined_call_operand.vmem [shape: bf16[32,128], index: 11, kind: input, shape index: {}]
  %s12 = inlined_call_operand.vmem [shape: f32[1,128], index: 12, kind: input, shape index: {}]
  %s13 = inlined_call_operand.hbm [shape: f32[16,128], index: 13, kind: output, shape index: {}]
  %s14 = sld [smem:[#allocation0]]
  $region93: #{transformer_ec_forward.1} parent=0
    _
  %s16 = ssub.s32 1, %s14
  %s17 = scalar_select 0, %s16, %s14
  $region1: #{transformer_ec_forward.1} parent=0
    #allocation3 [shape = 'u8[8192]{0}', space=vmem, size = 0x2000, scoped, tag = 'output window, operand 0']
    #allocation4 [shape = 's32[2]{0}', space=sflag, size = 0x8, scoped, tag = 'scoped memory for transformer_ec_forward.1']
    %18 = vsyncpa [#allocation4], 0
    %s19 = scalar_lea.sflag [#allocation4], 1
    %20 = vsyncpa %s19, 0
    loop: start=0, step=1, limit=6
    $region2: #{transformer_ec_forward.1} parent=1 // loop_pre_header
      _
    $region3: #{transformer_ec_forward.1} parent=1 // loop_header
      %s22 = sphi 0, %s26
      %p23 = scmp.ge.s32.totalorder %s22, 6
      %s29 = sphi 0, %s41
      %s30 = sphi 0, %s37
      %s31 = sphi 0, %s29
      %s32 = sphi 0, %s30
      %s33 = sphi 0, %s31
      %s34 = sphi 0, %s32
      %s44 = sphi 0, %s46
      %s47 = sphi 0, %s44
      %s48 = sphi 0, %s47
      %s64 = sphi 0, %s48
      %s70 = sphi 0, %s72
      %s73 = sphi 0, %s70
      %s74 = sphi 0, %s73
      %s90 = sphi 0, %s74
      %s96 = sphi 0, %s98
      %s99 = sphi 0, %s96
      %s100 = sphi 0, %s99
      %s116 = sphi 0, %s100
      %s122 = sphi 0, %s124
      %s125 = sphi 0, %s122
      %s126 = sphi 0, %s125
      %s142 = sphi 0, %s126
      %s148 = sphi 0, %s150
      %s151 = sphi 0, %s148
      %s152 = sphi 0, %s151
      %s168 = sphi 0, %s152
      %s174 = sphi 0, %s176
      %s177 = sphi 0, %s174
      %s178 = sphi 0, %s177
      %s194 = sphi 0, %s178
      %s200 = sphi 0, %s202
      %s203 = sphi 0, %s200
      %s204 = sphi 0, %s203
      %s220 = sphi 0, %s204
      %s226 = sphi 0, %s228
      %s229 = sphi 0, %s226
      %s230 = sphi 0, %s229
      %s246 = sphi 0, %s230
      %s252 = sphi 0, %s254
      %s255 = sphi 0, %s252
      %s256 = sphi 0, %s255
      %s272 = sphi 0, %s256
      %s278 = sphi 0, %s280
      %s281 = sphi 0, %s278
      %s282 = sphi 0, %s281
      %s298 = sphi 0, %s282
      %s304 = sphi 0, %s306
      %s307 = sphi 0, %s304
      %s308 = sphi 0, %s307
      %s324 = sphi 0, %s308
      %s328 = sphi 0, %s328
      %s330 = sphi 0, %s328
      %s331 = sphi 0, %s330
      %s345 = sphi 0, %s331
      %s349 = sphi 0, %s349
      %s351 = sphi 0, %s349
      %s352 = sphi 0, %s351
      %s366 = sphi 0, %s352
      %s372 = sphi 0, %s374
      %s375 = sphi 0, %s372
      %s376 = sphi 0, %s375
      %s392 = sphi 0, %s376
    $region4: #{transformer_ec_forward.1} parent=1 // loop_header_branch
      %25 = sbr.rel (%p23) target = $region8
    $region5: #{transformer_ec_forward.1} parent=1 // loop_body
      %s27 = ssub.s32 %s22, 1
      %s28 = ssub.s32 %s22, 2
      %s35 = sadd.s32 1, %s30
      %p36 = scmp.ge.s32.totalorder %s35, 2
      %s37 = scalar_select %p36, 0, %s35
      %s38 = sadd.s32 1, %s29
      %s39 = scalar_select %p36, %s38, %s29
      %p40 = scmp.ge.s32.totalorder %s39, 2
      %s41 = scalar_select %p40, 0, %s39
      %s42 = ssub.s32 %s29, %s41
      %p43 = scmp.eq.s32.totalorder %s42, 0
      %s45 = sadd.s32 %s44, 1
      %s46 = scalar_select %p43, %s44, %s45
      %p49 = pneg %p43
      %p50 = scmp.eq.s32.totalorder %s22, 3
      %p51 = por %p49, %p50
      %p52 = scmp.ne.s32.totalorder %s44, %s47
      %p53 = scmp.eq.s32.totalorder %s22, 0
      %p54 = por %p52, %p53
      %p55 = scmp.ne.s32.totalorder %s44, %s47
      %p56 = scmp.eq.s32.totalorder %s27, 3
      %p57 = por %p55, %p56
      %p58 = scmp.ne.s32.totalorder %s47, %s48
      %p59 = scmp.eq.s32.totalorder %s27, 0
      %p60 = por %p58, %p59
      %p61 = scmp.ne.s32.totalorder %s47, %s48
      %p62 = scmp.eq.s32.totalorder %s28, 3
      %p63 = por %p61, %p62
      %p65 = scmp.ne.s32.totalorder %s48, %s64
      %p66 = scmp.eq.s32.totalorder %s28, 0
      %p67 = por %p65, %p66
      %s68 = ssub.s32 %s30, %s37
      %p69 = scmp.eq.s32.totalorder %s68, 0
      %s71 = sadd.s32 %s70, 1
      %s72 = scalar_select %p69, %s70, %s71
      %p75 = pneg %p69
      %p76 = scmp.eq.s32.totalorder %s22, 3
      %p77 = por %p75, %p76
      %p78 = scmp.ne.s32.totalorder %s70, %s73
      %p79 = scmp.eq.s32.totalorder %s22, 0
      %p80 = por %p78, %p79
      %p81 = scmp.ne.s32.totalorder %s70, %s73
      %p82 = scmp.eq.s32.totalorder %s27, 3
      %p83 = por %p81, %p82
      %p84 = scmp.ne.s32.totalorder %s73, %s74
      %p85 = scmp.eq.s32.totalorder %s27, 0
      %p86 = por %p84, %p85
      %p87 = scmp.ne.s32.totalorder %s73, %s74
      %p88 = scmp.eq.s32.totalorder %s28, 3
      %p89 = por %p87, %p88
      %p91 = scmp.ne.s32.totalorder %s74, %s90
      %p92 = scmp.eq.s32.totalorder %s28, 0
      %p93 = por %p91, %p92
      %s94 = ssub.s32 %s30, %s37
      %p95 = scmp.eq.s32.totalorder %s94, 0
      %s97 = sadd.s32 %s96, 1
      %s98 = scalar_select %p95, %s96, %s97
      %p101 = pneg %p95
      %p102 = scmp.eq.s32.totalorder %s22, 3
      %p103 = por %p101, %p102
      %p104 = scmp.ne.s32.totalorder %s96, %s99
      %p105 = scmp.eq.s32.totalorder %s22, 0
      %p106 = por %p104, %p105
      %p107 = scmp.ne.s32.totalorder %s96, %s99
      %p108 = scmp.eq.s32.totalorder %s27, 3
      %p109 = por %p107, %p108
      %p110 = scmp.ne.s32.totalorder %s99, %s100
      %p111 = scmp.eq.s32.totalorder %s27, 0
      %p112 = por %p110, %p111
      %p113 = scmp.ne.s32.totalorder %s99, %s100
      %p114 = scmp.eq.s32.totalorder %s28, 3
      %p115 = por %p113, %p114
      %p117 = scmp.ne.s32.totalorder %s100, %s116
      %p118 = scmp.eq.s32.totalorder %s28, 0
      %p119 = por %p117, %p118
      %s120 = ssub.s32 %s30, %s37
      %p121 = scmp.eq.s32.totalorder %s120, 0
      %s123 = sadd.s32 %s122, 1
      %s124 = scalar_select %p121, %s122, %s123
      %p127 = pneg %p121
      %p128 = scmp.eq.s32.totalorder %s22, 3
      %p129 = por %p127, %p128
      %p130 = scmp.ne.s32.totalorder %s122, %s125
      %p131 = scmp.eq.s32.totalorder %s22, 0
      %p132 = por %p130, %p131
      %p133 = scmp.ne.s32.totalorder %s122, %s125
      %p134 = scmp.eq.s32.totalorder %s27, 3
      %p135 = por %p133, %p134
      %p136 = scmp.ne.s32.totalorder %s125, %s126
      %p137 = scmp.eq.s32.totalorder %s27, 0
      %p138 = por %p136, %p137
      %p139 = scmp.ne.s32.totalorder %s125, %s126
      %p140 = scmp.eq.s32.totalorder %s28, 3
      %p141 = por %p139, %p140
      %p143 = scmp.ne.s32.totalorder %s126, %s142
      %p144 = scmp.eq.s32.totalorder %s28, 0
      %p145 = por %p143, %p144
      %s146 = ssub.s32 %s30, %s37
      %p147 = scmp.eq.s32.totalorder %s146, 0
      %s149 = sadd.s32 %s148, 1
      %s150 = scalar_select %p147, %s148, %s149
      %p153 = pneg %p147
      %p154 = scmp.eq.s32.totalorder %s22, 3
      %p155 = por %p153, %p154
      %p156 = scmp.ne.s32.totalorder %s148, %s151
      %p157 = scmp.eq.s32.totalorder %s22, 0
      %p158 = por %p156, %p157
      %p159 = scmp.ne.s32.totalorder %s148, %s151
      %p160 = scmp.eq.s32.totalorder %s27, 3
      %p161 = por %p159, %p160
      %p162 = scmp.ne.s32.totalorder %s151, %s152
      %p163 = scmp.eq.s32.totalorder %s27, 0
      %p164 = por %p162, %p163
      %p165 = scmp.ne.s32.totalorder %s151, %s152
      %p166 = scmp.eq.s32.totalorder %s28, 3
      %p167 = por %p165, %p166
      %p169 = scmp.ne.s32.totalorder %s152, %s168
      %p170 = scmp.eq.s32.totalorder %s28, 0
      %p171 = por %p169, %p170
      %s172 = ssub.s32 %s30, %s37
      %p173 = scmp.eq.s32.totalorder %s172, 0
      %s175 = sadd.s32 %s174, 1
      %s176 = scalar_select %p173, %s174, %s175
      %p179 = pneg %p173
      %p180 = scmp.eq.s32.totalorder %s22, 3
      %p181 = por %p179, %p180
      %p182 = scmp.ne.s32.totalorder %s174, %s177
      %p183 = scmp.eq.s32.totalorder %s22, 0
      %p184 = por %p182, %p183
      %p185 = scmp.ne.s32.totalorder %s174, %s177
      %p186 = scmp.eq.s32.totalorder %s27, 3
      %p187 = por %p185, %p186
      %p188 = scmp.ne.s32.totalorder %s177, %s178
      %p189 = scmp.eq.s32.totalorder %s27, 0
      %p190 = por %p188, %p189
      %p191 = scmp.ne.s32.totalorder %s177, %s178
      %p192 = scmp.eq.s32.totalorder %s28, 3
      %p193 = por %p191, %p192
      %p195 = scmp.ne.s32.totalorder %s178, %s194
      %p196 = scmp.eq.s32.totalorder %s28, 0
      %p197 = por %p195, %p196
      %s198 = ssub.s32 %s30, %s37
      %p199 = scmp.eq.s32.totalorder %s198, 0
      %s201 = sadd.s32 %s200, 1
      %s202 = scalar_select %p199, %s200, %s201
      %p205 = pneg %p199
      %p206 = scmp.eq.s32.totalorder %s22, 3
      %p207 = por %p205, %p206
      %p208 = scmp.ne.s32.totalorder %s200, %s203
      %p209 = scmp.eq.s32.totalorder %s22, 0
      %p210 = por %p208, %p209
      %p211 = scmp.ne.s32.totalorder %s200, %s203
      %p212 = scmp.eq.s32.totalorder %s27, 3
      %p213 = por %p211, %p212
      %p214 = scmp.ne.s32.totalorder %s203, %s204
      %p215 = scmp.eq.s32.totalorder %s27, 0
      %p216 = por %p214, %p215
      %p217 = scmp.ne.s32.totalorder %s203, %s204
      %p218 = scmp.eq.s32.totalorder %s28, 3
      %p219 = por %p217, %p218
      %p221 = scmp.ne.s32.totalorder %s204, %s220
      %p222 = scmp.eq.s32.totalorder %s28, 0
      %p223 = por %p221, %p222
      %s224 = ssub.s32 %s30, %s37
      %p225 = scmp.eq.s32.totalorder %s224, 0
      %s227 = sadd.s32 %s226, 1
      %s228 = scalar_select %p225, %s226, %s227
      %p231 = pneg %p225
      %p232 = scmp.eq.s32.totalorder %s22, 3
      %p233 = por %p231, %p232
      %p234 = scmp.ne.s32.totalorder %s226, %s229
      %p235 = scmp.eq.s32.totalorder %s22, 0
      %p236 = por %p234, %p235
      %p237 = scmp.ne.s32.totalorder %s226, %s229
      %p238 = scmp.eq.s32.totalorder %s27, 3
      %p239 = por %p237, %p238
      %p240 = scmp.ne.s32.totalorder %s229, %s230
      %p241 = scmp.eq.s32.totalorder %s27, 0
      %p242 = por %p240, %p241
      %p243 = scmp.ne.s32.totalorder %s229, %s230
      %p244 = scmp.eq.s32.totalorder %s28, 3
      %p245 = por %p243, %p244
      %p247 = scmp.ne.s32.totalorder %s230, %s246
      %p248 = scmp.eq.s32.totalorder %s28, 0
      %p249 = por %p247, %p248
      %s250 = ssub.s32 %s30, %s37
      %p251 = scmp.eq.s32.totalorder %s250, 0
      %s253 = sadd.s32 %s252, 1
      %s254 = scalar_select %p251, %s252, %s253
      %p257 = pneg %p251
      %p258 = scmp.eq.s32.totalorder %s22, 3
      %p259 = por %p257, %p258
      %p260 = scmp.ne.s32.totalorder %s252, %s255
      %p261 = scmp.eq.s32.totalorder %s22, 0
      %p262 = por %p260, %p261
      %p263 = scmp.ne.s32.totalorder %s252, %s255
      %p264 = scmp.eq.s32.totalorder %s27, 3
      %p265 = por %p263, %p264
      %p266 = scmp.ne.s32.totalorder %s255, %s256
      %p267 = scmp.eq.s32.totalorder %s27, 0
      %p268 = por %p266, %p267
      %p269 = scmp.ne.s32.totalorder %s255, %s256
      %p270 = scmp.eq.s32.totalorder %s28, 3
      %p271 = por %p269, %p270
      %p273 = scmp.ne.s32.totalorder %s256, %s272
      %p274 = scmp.eq.s32.totalorder %s28, 0
      %p275 = por %p273, %p274
      %s276 = ssub.s32 %s30, %s37
      %p277 = scmp.eq.s32.totalorder %s276, 0
      %s279 = sadd.s32 %s278, 1
      %s280 = scalar_select %p277, %s278, %s279
      %p283 = pneg %p277
      %p284 = scmp.eq.s32.totalorder %s22, 3
      %p285 = por %p283, %p284
      %p286 = scmp.ne.s32.totalorder %s278, %s281
      %p287 = scmp.eq.s32.totalorder %s22, 0
      %p288 = por %p286, %p287
      %p289 = scmp.ne.s32.totalorder %s278, %s281
      %p290 = scmp.eq.s32.totalorder %s27, 3
      %p291 = por %p289, %p290
      %p292 = scmp.ne.s32.totalorder %s281, %s282
      %p293 = scmp.eq.s32.totalorder %s27, 0
      %p294 = por %p292, %p293
      %p295 = scmp.ne.s32.totalorder %s281, %s282
      %p296 = scmp.eq.s32.totalorder %s28, 3
      %p297 = por %p295, %p296
      %p299 = scmp.ne.s32.totalorder %s282, %s298
      %p300 = scmp.eq.s32.totalorder %s28, 0
      %p301 = por %p299, %p300
      %s302 = ssub.s32 %s30, %s37
      %p303 = scmp.eq.s32.totalorder %s302, 0
      %s305 = sadd.s32 %s304, 1
      %s306 = scalar_select %p303, %s304, %s305
      %p309 = pneg %p303
      %p310 = scmp.eq.s32.totalorder %s22, 3
      %p311 = por %p309, %p310
      %p312 = scmp.ne.s32.totalorder %s304, %s307
      %p313 = scmp.eq.s32.totalorder %s22, 0
      %p314 = por %p312, %p313
      %p315 = scmp.ne.s32.totalorder %s304, %s307
      %p316 = scmp.eq.s32.totalorder %s27, 3
      %p317 = por %p315, %p316
      %p318 = scmp.ne.s32.totalorder %s307, %s308
      %p319 = scmp.eq.s32.totalorder %s27, 0
      %p320 = por %p318, %p319
      %p321 = scmp.ne.s32.totalorder %s307, %s308
      %p322 = scmp.eq.s32.totalorder %s28, 3
      %p323 = por %p321, %p322
      %p325 = scmp.ne.s32.totalorder %s308, %s324
      %p326 = scmp.eq.s32.totalorder %s28, 0
      %p327 = por %p325, %p326
      %s329 = sadd.s32 %s328, 1
      %p332 = scmp.eq.s32.totalorder %s22, 3
      %p333 = scmp.ne.s32.totalorder %s328, %s330
      %p334 = scmp.eq.s32.totalorder %s22, 0
      %p335 = por %p333, %p334
      %p336 = scmp.ne.s32.totalorder %s328, %s330
      %p337 = scmp.eq.s32.totalorder %s27, 3
      %p338 = por %p336, %p337
      %p339 = scmp.ne.s32.totalorder %s330, %s331
      %p340 = scmp.eq.s32.totalorder %s27, 0
      %p341 = por %p339, %p340
      %p342 = scmp.ne.s32.totalorder %s330, %s331
      %p343 = scmp.eq.s32.totalorder %s28, 3
      %p344 = por %p342, %p343
      %p346 = scmp.ne.s32.totalorder %s331, %s345
      %p347 = scmp.eq.s32.totalorder %s28, 0
      %p348 = por %p346, %p347
      %s350 = sadd.s32 %s349, 1
      %p353 = scmp.eq.s32.totalorder %s22, 3
      %p354 = scmp.ne.s32.totalorder %s349, %s351
      %p355 = scmp.eq.s32.totalorder %s22, 0
      %p356 = por %p354, %p355
      %p357 = scmp.ne.s32.totalorder %s349, %s351
      %p358 = scmp.eq.s32.totalorder %s27, 3
      %p359 = por %p357, %p358
      %p360 = scmp.ne.s32.totalorder %s351, %s352
      %p361 = scmp.eq.s32.totalorder %s27, 0
      %p362 = por %p360, %p361
      %p363 = scmp.ne.s32.totalorder %s351, %s352
      %p364 = scmp.eq.s32.totalorder %s28, 3
      %p365 = por %p363, %p364
      %p367 = scmp.ne.s32.totalorder %s352, %s366
      %p368 = scmp.eq.s32.totalorder %s28, 0
      %p369 = por %p367, %p368
      %s370 = ssub.s32 %s29, %s41
      %p371 = scmp.eq.s32.totalorder %s370, 0
      %s373 = sadd.s32 %s372, 1
      %s374 = scalar_select %p371, %s372, %s373
      %p377 = pneg %p371
      %p378 = scmp.eq.s32.totalorder %s22, 3
      %p379 = por %p377, %p378
      %p380 = scmp.ne.s32.totalorder %s372, %s375
      %p381 = scmp.eq.s32.totalorder %s22, 0
      %p382 = por %p380, %p381
      %p383 = scmp.ne.s32.totalorder %s372, %s375
      %p384 = scmp.eq.s32.totalorder %s27, 3
      %p385 = por %p383, %p384
      %p386 = scmp.ne.s32.totalorder %s375, %s376
      %p387 = scmp.eq.s32.totalorder %s27, 0
      %p388 = por %p386, %p387
      %p389 = scmp.ne.s32.totalorder %s375, %s376
      %p390 = scmp.eq.s32.totalorder %s28, 3
      %p391 = por %p389, %p390
      %p393 = scmp.ne.s32.totalorder %s376, %s392
      %p394 = scmp.eq.s32.totalorder %s28, 0
      %p395 = por %p393, %p394
      %p396 = scmp.le.s32.totalorder 1, %s22
      %p397 = scmp.lt.s32.totalorder %s22, 5
      %p398 = pnand %p396, %p397
      %p399 = pneg %p398
      // Predicated region
      $region9: #{transformer_ec_forward.1} parent=5 // pred_check
        _
      $region10: #{transformer_ec_forward.1} parent=5 // pred_check_branch
        %401 = sbr.rel (%p398) target = $region12
      $region11: #{transformer_ec_forward.1} parent=5 // pred_region
        %s402 = ssub.s32 %s22, 1
        // Predicated region
        $region13: #{transformer_ec_forward.1} parent=11 // pred_check
          %p403 = pneg %p341
        $region14: #{transformer_ec_forward.1} parent=11 // pred_check_branch
          %405 = sbr.rel (%p403) target = $region16
        $region15: #{transformer_ec_forward.1} parent=11 // pred_region
          _
        $region16: #{transformer_ec_forward.1} parent=11 // pred_fallthru
          _
        // Predicated region
        $region17: #{transformer_ec_forward.1} parent=11 // pred_check
          %p406 = pneg %p362
        $region18: #{transformer_ec_forward.1} parent=11 // pred_check_branch
          %408 = sbr.rel (%p406) target = $region20
        $region19: #{transformer_ec_forward.1} parent=11 // pred_region
          _
        $region20: #{transformer_ec_forward.1} parent=11 // pred_fallthru
          _
      $region12: #{transformer_ec_forward.1} parent=5 // pred_fallthru
        _
      %p409 = scmp.lt.s32.totalorder %s22, 4
      // Predicated region
      $region21: #{transformer_ec_forward.1} parent=5 // pred_check
        %p410 = pneg %p409
      $region22: #{transformer_ec_forward.1} parent=5 // pred_check_branch
        %412 = sbr.rel (%p410) target = $region24
      $region23: #{transformer_ec_forward.1} parent=5 // pred_region
        // Predicated region
        $region25: #{transformer_ec_forward.1} parent=23 // pred_check
          %p413 = pneg %p54
        $region26: #{transformer_ec_forward.1} parent=23 // pred_check_branch
          %415 = sbr.rel (%p413) target = $region28
        $region27: #{transformer_ec_forward.1} parent=23 // pred_region
          %p416 = scmp.lt.s32.totalorder %s29, 1
          %s417 = scalar_select %p416, %s29, 1
          %s418 = smul.addr %s417, 8
          %s419 = scalar_lea.vmem %s0, %s418
        $region28: #{transformer_ec_forward.1} parent=23 // pred_fallthru
          _
        // Predicated region
        $region29: #{transformer_ec_forward.1} parent=23 // pred_check
          %p420 = pneg %p80
        $region30: #{transformer_ec_forward.1} parent=23 // pred_check_branch
          %422 = sbr.rel (%p420) target = $region32
        $region31: #{transformer_ec_forward.1} parent=23 // pred_region
          %p423 = scmp.lt.s32.totalorder %s30, 1
          %s424 = scalar_select %p423, %s30, 1
          %s425 = smul.addr %s424, 4
          %s426 = smul.addr %s425, 4
          %s427 = scalar_lea.vmem %s1, %s426
        $region32: #{transformer_ec_forward.1} parent=23 // pred_fallthru
          _
        // Predicated region
        $region33: #{transformer_ec_forward.1} parent=23 // pred_check
          %p428 = pneg %p106
        $region34: #{transformer_ec_forward.1} parent=23 // pred_check_branch
          %430 = sbr.rel (%p428) target = $region36
        $region35: #{transformer_ec_forward.1} parent=23 // pred_region
          %p431 = scmp.lt.s32.totalorder %s30, 1
          %s432 = scalar_select %p431, %s30, 1
          %s433 = scalar_lea.vmem %s2, %s432
        $region36: #{transformer_ec_forward.1} parent=23 // pred_fallthru
          _
        // Predicated region
        $region37: #{transformer_ec_forward.1} parent=23 // pred_check
          %p434 = pneg %p132
        $region38: #{transformer_ec_forward.1} parent=23 // pred_check_branch
          %436 = sbr.rel (%p434) target = $region40
        $region39: #{transformer_ec_forward.1} parent=23 // pred_region
          %p437 = scmp.lt.s32.totalorder %s30, 1
          %s438 = scalar_select %p437, %s30, 1
          %s439 = scalar_lea.vmem %s3, %s438
        $region40: #{transformer_ec_forward.1} parent=23 // pred_fallthru
          _
        // Predicated region
        $region41: #{transformer_ec_forward.1} parent=23 // pred_check
          %p440 = pneg %p158
        $region42: #{transformer_ec_forward.1} parent=23 // pred_check_branch
          %442 = sbr.rel (%p440) target = $region44
        $region43: #{transformer_ec_forward.1} parent=23 // pred_region
          %p443 = scmp.lt.s32.totalorder %s30, 1
          %s444 = scalar_select %p443, %s30, 1
          %s445 = scalar_lea.vmem %s4, %s444
        $region44: #{transformer_ec_forward.1} parent=23 // pred_fallthru
          _
        // Predicated region
        $region45: #{transformer_ec_forward.1} parent=23 // pred_check
          %p446 = pneg %p184
        $region46: #{transformer_ec_forward.1} parent=23 // pred_check_branch
          %448 = sbr.rel (%p446) target = $region48
        $region47: #{transformer_ec_forward.1} parent=23 // pred_region
          %p449 = scmp.lt.s32.totalorder %s30, 1
          %s450 = scalar_select %p449, %s30, 1
          %s451 = smul.addr %s450, 4
          %s452 = smul.addr %s451, 4
          %s453 = scalar_lea.vmem %s5, %s452
        $region48: #{transformer_ec_forward.1} parent=23 // pred_fallthru
          _
        // Predicated region
        $region49: #{transformer_ec_forward.1} parent=23 // pred_check
          %p454 = pneg %p210
        $region50: #{transformer_ec_forward.1} parent=23 // pred_check_branch
          %456 = sbr.rel (%p454) target = $region52
        $region51: #{transformer_ec_forward.1} parent=23 // pred_region
          %p457 = scmp.lt.s32.totalorder %s30, 1
          %s458 = scalar_select %p457, %s30, 1
          %s459 = scalar_lea.vmem %s6, %s458
        $region52: #{transformer_ec_forward.1} parent=23 // pred_fallthru
          _
        // Predicated region
        $region53: #{transformer_ec_forward.1} parent=23 // pred_check
          %p460 = pneg %p236
        $region54: #{transformer_ec_forward.1} parent=23 // pred_check_branch
          %462 = sbr.rel (%p460) target = $region56
        $region55: #{transformer_ec_forward.1} parent=23 // pred_region
          %p463 = scmp.lt.s32.totalorder %s30, 1
          %s464 = scalar_select %p463, %s30, 1
          %s465 = smul.addr %s464, 8
          %s466 = smul.addr %s465, 4
          %s467 = scalar_lea.vmem %s7, %s466
        $region56: #{transformer_ec_forward.1} parent=23 // pred_fallthru
          _
        // Predicated region
        $region57: #{transformer_ec_forward.1} parent=23 // pred_check
          %p468 = pneg %p262
        $region58: #{transformer_ec_forward.1} parent=23 // pred_check_branch
          %470 = sbr.rel (%p468) target = $region60
        $region59: #{transformer_ec_forward.1} parent=23 // pred_region
          %p471 = scmp.lt.s32.totalorder %s30, 1
          %s472 = scalar_select %p471, %s30, 1
          %s473 = scalar_lea.vmem %s8, %s472
        $region60: #{transformer_ec_forward.1} parent=23 // pred_fallthru
          _
        // Predicated region
        $region61: #{transformer_ec_forward.1} parent=23 // pred_check
          %p474 = pneg %p288
        $region62: #{transformer_ec_forward.1} parent=23 // pred_check_branch
          %476 = sbr.rel (%p474) target = $region64
        $region63: #{transformer_ec_forward.1} parent=23 // pred_region
          %p477 = scmp.lt.s32.totalorder %s30, 1
          %s478 = scalar_select %p477, %s30, 1
          %s479 = scalar_lea.vmem %s9, %s478
        $region64: #{transformer_ec_forward.1} parent=23 // pred_fallthru
          _
        // Predicated region
        $region65: #{transformer_ec_forward.1} parent=23 // pred_check
          %p480 = pneg %p314
        $region66: #{transformer_ec_forward.1} parent=23 // pred_check_branch
          %482 = sbr.rel (%p480) target = $region68
        $region67: #{transformer_ec_forward.1} parent=23 // pred_region
          %p483 = scmp.lt.s32.totalorder %s30, 1
          %s484 = scalar_select %p483, %s30, 1
          %s485 = scalar_lea.vmem %s10, %s484
        $region68: #{transformer_ec_forward.1} parent=23 // pred_fallthru
          _
      $region24: #{transformer_ec_forward.1} parent=5 // pred_fallthru
        _
      %p486 = scmp.le.s32.totalorder 1, %s22
      %p487 = scmp.lt.s32.totalorder %s22, 5
      %p488 = pnand %p486, %p487
      %p489 = pneg %p488
      // Predicated region
      $region69: #{transformer_ec_forward.1} parent=5 // pred_check
        _
      $region70: #{transformer_ec_forward.1} parent=5 // pred_check_branch
        %491 = sbr.rel (%p488) target = $region72
      $region71: #{transformer_ec_forward.1} parent=5 // pred_region
        %s492 = ssub.s32 %s22, 1
        %p493 = scmp.lt.s32.totalorder %s31, 1
        %s494 = scalar_select %p493, %s31, 1
        %s495 = smul.addr %s494, 8
        %s496 = scalar_lea.vmem %s0, %s495
        %p497 = pneg %p60
        %p498 = pneg %p57
        %p499 = scmp.lt.s32.totalorder %s32, 1
        %s500 = scalar_select %p499, %s32, 1
        %s501 = smul.addr %s500, 4
        %s502 = smul.addr %s501, 4
        %s503 = scalar_lea.vmem %s1, %s502
        %p504 = pneg %p86
        %p505 = pneg %p83
        %p506 = scmp.lt.s32.totalorder %s32, 1
        %s507 = scalar_select %p506, %s32, 1
        %s508 = scalar_lea.vmem %s2, %s507
        %p509 = pneg %p112
        %p510 = pneg %p109
        %p511 = scmp.lt.s32.totalorder %s32, 1
        %s512 = scalar_select %p511, %s32, 1
        %s513 = scalar_lea.vmem %s3, %s512
        %p514 = pneg %p138
        %p515 = pneg %p135
        %p516 = scmp.lt.s32.totalorder %s32, 1
        %s517 = scalar_select %p516, %s32, 1
        %s518 = scalar_lea.vmem %s4, %s517
        %p519 = pneg %p164
        %p520 = pneg %p161
        %p521 = scmp.lt.s32.totalorder %s32, 1
        %s522 = scalar_select %p521, %s32, 1
        %s523 = smul.addr %s522, 4
        %s524 = smul.addr %s523, 4
        %s525 = scalar_lea.vmem %s5, %s524
        %p526 = pneg %p190
        %p527 = pneg %p187
        %p528 = scmp.lt.s32.totalorder %s32, 1
        %s529 = scalar_select %p528, %s32, 1
        %s530 = scalar_lea.vmem %s6, %s529
        %p531 = pneg %p216
        %p532 = pneg %p213
        %p533 = scmp.lt.s32.totalorder %s32, 1
        %s534 = scalar_select %p533, %s32, 1
        %s535 = smul.addr %s534, 8
        %s536 = smul.addr %s535, 4
        %s537 = scalar_lea.vmem %s7, %s536
        %p538 = pneg %p242
        %p539 = pneg %p239
        %p540 = scmp.lt.s32.totalorder %s32, 1
        %s541 = scalar_select %p540, %s32, 1
        %s542 = scalar_lea.vmem %s8, %s541
        %p543 = pneg %p268
        %p544 = pneg %p265
        %p545 = scmp.lt.s32.totalorder %s32, 1
        %s546 = scalar_select %p545, %s32, 1
        %s547 = scalar_lea.vmem %s9, %s546
        %p548 = pneg %p294
        %p549 = pneg %p291
        %p550 = scmp.lt.s32.totalorder %s32, 1
        %s551 = scalar_select %p550, %s32, 1
        %s552 = scalar_lea.vmem %s10, %s551
        %p553 = pneg %p320
        %p554 = pneg %p317
        %p555 = pneg %p341
        %p556 = pneg %p338
        %p557 = pneg %p362
        %p558 = pneg %p359
        %p559 = pneg %p388
        %p560 = pneg %p385
        %s561 = sand.u32 %s375, 1
        %s562 = scalar_lea.sflag [#allocation4], %s561
        %s563 = sand.u32 %s375, 1
        %s564 = smul.addr %s563, 8
        %s565 = scalar_lea.vmem [#allocation3], %s564
        %p566 = scmp.lt.s32.totalorder %s31, 1
        %s567 = scalar_select %p566, %s31, 1
        %s568 = smul.addr %s567, 8
        %s569 = scalar_lea.vmem %s0, %s568
        %p570 = scmp.lt.s32.totalorder %s32, 1
        %s571 = scalar_select %p570, %s32, 1
        %s572 = smul.addr %s571, 4
        %s573 = smul.addr %s572, 4
        %s574 = scalar_lea.vmem %s1, %s573
        %p575 = scmp.lt.s32.totalorder %s32, 1
        %s576 = scalar_select %p575, %s32, 1
        %s577 = scalar_lea.vmem %s2, %s576
        %p578 = scmp.lt.s32.totalorder %s32, 1
        %s579 = scalar_select %p578, %s32, 1
        %s580 = scalar_lea.vmem %s3, %s579
        %p581 = scmp.lt.s32.totalorder %s32, 1
        %s582 = scalar_select %p581, %s32, 1
        %s583 = scalar_lea.vmem %s4, %s582
        %p584 = scmp.lt.s32.totalorder %s32, 1
        %s585 = scalar_select %p584, %s32, 1
        %s586 = smul.addr %s585, 4
        %s587 = smul.addr %s586, 4
        %s588 = scalar_lea.vmem %s5, %s587
        %p589 = scmp.lt.s32.totalorder %s32, 1
        %s590 = scalar_select %p589, %s32, 1
        %s591 = scalar_lea.vmem %s6, %s590
        %p592 = scmp.lt.s32.totalorder %s32, 1
        %s593 = scalar_select %p592, %s32, 1
        %s594 = smul.addr %s593, 8
        %s595 = smul.addr %s594, 4
        %s596 = scalar_lea.vmem %s7, %s595
        %p597 = scmp.lt.s32.totalorder %s32, 1
        %s598 = scalar_select %p597, %s32, 1
        %s599 = scalar_lea.vmem %s8, %s598
        %p600 = scmp.lt.s32.totalorder %s32, 1
        %s601 = scalar_select %p600, %s32, 1
        %s602 = scalar_lea.vmem %s9, %s601
        %p603 = scmp.lt.s32.totalorder %s32, 1
        %s604 = scalar_select %p603, %s32, 1
        %s605 = scalar_lea.vmem %s10, %s604
        %p607 = scmp.eq.s32.totalorder %s32, 0
        // Predicated region
        $region73: #{transformer_ec_forward.1} parent=71 // pred_check
          %p608 = pneg %p607
        $region74: #{transformer_ec_forward.1} parent=71 // pred_check_branch
          %610 = sbr.rel (%p608) target = $region76
        $region75: #{transformer_ec_forward.1} parent=71 // pred_region
          %v611 = vld [vmem:[%s569] sm:$0xff]
          %vm612 = vcmask 261120
          %613 = vst.msk [vmem:[#allocation2] sm:$0xff] %vm612, %v611
        $region76: #{transformer_ec_forward.1} parent=71 // pred_fallthru
          _
        %v614 = vld [vmem:[#allocation2] sm:$0xff]
        %v615 = vpack.c.bf16 %v614, %v614
        %v616 = vld [vmem:[%s574] sm:$0xf]
        %v617 = vld [vmem:[%s574 + $0x4] sm:$0xf]
        %v618 = vld [vmem:[%s574 + $0x8] sm:$0xf]
        %v619 = vld [vmem:[%s574 + $0xc] sm:$0xf]
        %v620 = vld [vmem:[%s577] sm:$0x1]
        %v622 = vlaneseq
        %v623 = vshrl.u32 %v622, 7
        %v624 = vsub.s32 0, %v623
        %v625 = vrot.slane %v620, %v624
        %v631 = vunpack.c.l.b16 %v616
        %v632 = vunpack.c.l.b16 %v617
        %v633 = vunpack.c.l.b16 %v618
        %v634 = vunpack.c.l.b16 %v619
        %v635 = vpack.c.b16 %v632, %v631
        %v636 = vpack.c.b16 %v634, %v633
        %vm639 = vcmask 261120
        %v641 = vsel %vm639, %v615, 0
        %643 = vmatprep.subr.bf16.mxu0 0
        %644 = vmatpush1.bf16.msra.mxu0 0
        %645 = vmatprep.subr.bf16.mxu0 0
        %646 = vmatpush1.bf16.msra.mxu0 0
        %647 = vmatprep.subr.bf16.mxu0 0
        %648 = vmatpush1.bf16.msra.mxu0 0
        %649 = vmatprep.subr.bf16.mxu0 0
        %650 = vmatpush1.bf16.msra.mxu0 0
        %651 = vmatprep.subr.bf16.mxu0 0
        %652 = vmatpush1.bf16.msra.mxu0 0
        %653 = vmatprep.subr.bf16.mxu0 0
        %654 = vmatpush1.bf16.msra.mxu0 0
        %655 = vmatprep.subr.bf16.mxu0 0
        %656 = vmatpush1.bf16.msra.mxu0 %v636
        %657 = vmatprep.subr.bf16.mxu0 0
        %658 = vmatpush1.bf16.msra.mxu0 %v635
        %659 = vmatprep.subr.bf16.mxu0 0
        %660 = vmatpush2.bf16.msra.mxu0 0
        %661 = vmatprep.subr.bf16.mxu0 0
        %662 = vmatpush2.bf16.msra.mxu0 0
        %663 = vmatprep.subr.bf16.mxu0 0
        %664 = vmatpush2.bf16.msra.mxu0 0
        %665 = vmatprep.subr.bf16.mxu0 0
        %666 = vmatpush2.bf16.msra.mxu0 0
        %667 = vmatprep.subr.bf16.mxu0 0
        %668 = vmatpush2.bf16.msra.mxu0 0
        %669 = vmatprep.subr.bf16.mxu0 0
        %670 = vmatpush2.bf16.msra.mxu0 0
        %671 = vmatprep.subr.bf16.mxu0 0
        %672 = vmatpush2.bf16.msra.mxu0 0
        %673 = vmatprep.subr.bf16.mxu0 0
        %674 = vmatpush2.bf16.msra.mxu0 0
        %675 = vmatprep.mubr.bf16.mxu0 0
        %676 = vmatmul.mubr.bf16.gmra.mxu0 %v641
        %v677 = vpop.f32.mrf.mxu0
        %v678 = vadd.f32 %v625, %v677
        %v679 = vpop.f32.mrf.mxu0
        %v680 = vpop.f32.mrf.mxu0
        %v681 = vpop.f32.mrf.mxu0
        %682 = vdwg.mxu0
        %684 = vrot.lane.b32.xlu0 %v678, 120
        %v685 = vpop.permute.xlu0 %684
        %687 = vrot.lane.b32.xlu0 %v678, 112
        %v688 = vpop.permute.xlu0 %687
        %690 = vrot.lane.b32.xlu0 %v678, 104
        %v691 = vpop.permute.xlu0 %690
        %v693 = vpack.c.bf16 %v678, %v678
        %v694 = vpack.c.bf16 %v685, %v685
        %v695 = vpack.c.bf16 %v688, %v688
        %v696 = vpack.c.bf16 %v691, %v691
        %vm697 = vcmask 64512
        %v699 = vsel %vm697, %v693, 0
        %701 = vmatprep.subr.bf16.mxu0 0
        %702 = vmatpush1.bf16.xpose.msra.mxu0 0
        %703 = vmatprep.subr.bf16.mxu0 0
        %704 = vmatpush1.bf16.xpose.msra.mxu0 0
        %705 = vmatprep.subr.bf16.mxu0 0
        %706 = vmatpush1.bf16.xpose.msra.mxu0 0
        %707 = vmatprep.subr.bf16.mxu0 0
        %708 = vmatpush1.bf16.xpose.msra.mxu0 0
        %709 = vmatprep.subr.bf16.mxu0 0
        %710 = vmatpush1.bf16.xpose.msra.mxu0 0
        %711 = vmatprep.subr.bf16.mxu0 0
        %712 = vmatpush1.bf16.xpose.msra.mxu0 0
        %713 = vmatprep.subr.bf16.mxu0 0
        %714 = vmatpush1.bf16.xpose.msra.mxu0 0
        %715 = vmatprep.subr.bf16.mxu0 0
        %716 = vmatpush1.bf16.xpose.msra.mxu0 %v699
        %717 = vmatprep.subr.bf16.mxu0 0
        %718 = vmatpush2.bf16.xpose.msra.mxu0 0
        %719 = vmatprep.subr.bf16.mxu0 0
        %720 = vmatpush2.bf16.xpose.msra.mxu0 0
        %721 = vmatprep.subr.bf16.mxu0 0
        %722 = vmatpush2.bf16.xpose.msra.mxu0 0
        %723 = vmatprep.subr.bf16.mxu0 0
        %724 = vmatpush2.bf16.xpose.msra.mxu0 0
        %725 = vmatprep.subr.bf16.mxu0 0
        %726 = vmatpush2.bf16.xpose.msra.mxu0 0
        %727 = vmatprep.subr.bf16.mxu0 0
        %728 = vmatpush2.bf16.xpose.msra.mxu0 0
        %729 = vmatprep.subr.bf16.mxu0 0
        %730 = vmatpush2.bf16.xpose.msra.mxu0 0
        %731 = vmatprep.subr.bf16.mxu0 0
        %732 = vmatpush2.bf16.xpose.msra.mxu0 0
        %733 = vmatprep.mubr.bf16.mxu0 0
        %734 = vmatmul.mubr.bf16.gmra.mxu0 %v699
        %v735 = vpop.f32.mrf.mxu0
        %v736 = vadd.f32 0.0, %v735
        %v737 = vpop.f32.mrf.mxu0
        %v738 = vpop.f32.mrf.mxu0
        %v739 = vpop.f32.mrf.mxu0
        %740 = vdwg.mxu0
        %v742 = vsel %vm697, %v694, 0
        %744 = vmatprep.subr.bf16.mxu0 0
        %745 = vmatpush1.bf16.xpose.msra.mxu0 0
        %746 = vmatprep.subr.bf16.mxu0 0
        %747 = vmatpush1.bf16.xpose.msra.mxu0 0
        %748 = vmatprep.subr.bf16.mxu0 0
        %749 = vmatpush1.bf16.xpose.msra.mxu0 0
        %750 = vmatprep.subr.bf16.mxu0 0
        %751 = vmatpush1.bf16.xpose.msra.mxu0 0
        %752 = vmatprep.subr.bf16.mxu0 0
        %753 = vmatpush1.bf16.xpose.msra.mxu0 0
        %754 = vmatprep.subr.bf16.mxu0 0
        %755 = vmatpush1.bf16.xpose.msra.mxu0 0
        %756 = vmatprep.subr.bf16.mxu0 0
        %757 = vmatpush1.bf16.xpose.msra.mxu0 0
        %758 = vmatprep.subr.bf16.mxu0 0
        %759 = vmatpush1.bf16.xpose.msra.mxu0 %v742
        %760 = vmatprep.subr.bf16.mxu0 0
        %761 = vmatpush2.bf16.xpose.msra.mxu0 0
        %762 = vmatprep.subr.bf16.mxu0 0
        %763 = vmatpush2.bf16.xpose.msra.mxu0 0
        %764 = vmatprep.subr.bf16.mxu0 0
        %765 = vmatpush2.bf16.xpose.msra.mxu0 0
        %766 = vmatprep.subr.bf16.mxu0 0
        %767 = vmatpush2.bf16.xpose.msra.mxu0 0
        %768 = vmatprep.subr.bf16.mxu0 0
        %769 = vmatpush2.bf16.xpose.msra.mxu0 0
        %770 = vmatprep.subr.bf16.mxu0 0
        %771 = vmatpush2.bf16.xpose.msra.mxu0 0
        %772 = vmatprep.subr.bf16.mxu0 0
        %773 = vmatpush2.bf16.xpose.msra.mxu0 0
        %774 = vmatprep.subr.bf16.mxu0 0
        %775 = vmatpush2.bf16.xpose.msra.mxu0 0
        %776 = vmatprep.mubr.bf16.mxu0 0
        %777 = vmatmul.mubr.bf16.gmra.mxu0 %v742
        %v778 = vpop.f32.mrf.mxu0
        %v779 = vadd.f32 0.0, %v778
        %v780 = vpop.f32.mrf.mxu0
        %v781 = vpop.f32.mrf.mxu0
        %v782 = vpop.f32.mrf.mxu0
        %783 = vdwg.mxu0
        %v785 = vsel %vm697, %v695, 0
        %787 = vmatprep.subr.bf16.mxu0 0
        %788 = vmatpush1.bf16.xpose.msra.mxu0 0
        %789 = vmatprep.subr.bf16.mxu0 0
        %790 = vmatpush1.bf16.xpose.msra.mxu0 0
        %791 = vmatprep.subr.bf16.mxu0 0
        %792 = vmatpush1.bf16.xpose.msra.mxu0 0
        %793 = vmatprep.subr.bf16.mxu0 0
        %794 = vmatpush1.bf16.xpose.msra.mxu0 0
        %795 = vmatprep.subr.bf16.mxu0 0
        %796 = vmatpush1.bf16.xpose.msra.mxu0 0
        %797 = vmatprep.subr.bf16.mxu0 0
        %798 = vmatpush1.bf16.xpose.msra.mxu0 0
        %799 = vmatprep.subr.bf16.mxu0 0
        %800 = vmatpush1.bf16.xpose.msra.mxu0 0
        %801 = vmatprep.subr.bf16.mxu0 0
        %802 = vmatpush1.bf16.xpose.msra.mxu0 %v785
        %803 = vmatprep.subr.bf16.mxu0 0
        %804 = vmatpush2.bf16.xpose.msra.mxu0 0
        %805 = vmatprep.subr.bf16.mxu0 0
        %806 = vmatpush2.bf16.xpose.msra.mxu0 0
        %807 = vmatprep.subr.bf16.mxu0 0
        %808 = vmatpush2.bf16.xpose.msra.mxu0 0
        %809 = vmatprep.subr.bf16.mxu0 0
        %810 = vmatpush2.bf16.xpose.msra.mxu0 0
        %811 = vmatprep.subr.bf16.mxu0 0
        %812 = vmatpush2.bf16.xpose.msra.mxu0 0
        %813 = vmatprep.subr.bf16.mxu0 0
        %814 = vmatpush2.bf16.xpose.msra.mxu0 0
        %815 = vmatprep.subr.bf16.mxu0 0
        %816 = vmatpush2.bf16.xpose.msra.mxu0 0
        %817 = vmatprep.subr.bf16.mxu0 0
        %818 = vmatpush2.bf16.xpose.msra.mxu0 0
        %819 = vmatprep.mubr.bf16.mxu0 0
        %820 = vmatmul.mubr.bf16.gmra.mxu0 %v785
        %v821 = vpop.f32.mrf.mxu0
        %v822 = vadd.f32 0.0, %v821
        %v823 = vpop.f32.mrf.mxu0
        %v824 = vpop.f32.mrf.mxu0
        %v825 = vpop.f32.mrf.mxu0
        %826 = vdwg.mxu0
        %v828 = vsel %vm697, %v696, 0
        %830 = vmatprep.subr.bf16.mxu0 0
        %831 = vmatpush1.bf16.xpose.msra.mxu0 0
        %832 = vmatprep.subr.bf16.mxu0 0
        %833 = vmatpush1.bf16.xpose.msra.mxu0 0
        %834 = vmatprep.subr.bf16.mxu0 0
        %835 = vmatpush1.bf16.xpose.msra.mxu0 0
        %836 = vmatprep.subr.bf16.mxu0 0
        %837 = vmatpush1.bf16.xpose.msra.mxu0 0
        %838 = vmatprep.subr.bf16.mxu0 0
        %839 = vmatpush1.bf16.xpose.msra.mxu0 0
        %840 = vmatprep.subr.bf16.mxu0 0
        %841 = vmatpush1.bf16.xpose.msra.mxu0 0
        %842 = vmatprep.subr.bf16.mxu0 0
        %843 = vmatpush1.bf16.xpose.msra.mxu0 0
        %844 = vmatprep.subr.bf16.mxu0 0
        %845 = vmatpush1.bf16.xpose.msra.mxu0 %v828
        %846 = vmatprep.subr.bf16.mxu0 0
        %847 = vmatpush2.bf16.xpose.msra.mxu0 0
        %848 = vmatprep.subr.bf16.mxu0 0
        %849 = vmatpush2.bf16.xpose.msra.mxu0 0
        %850 = vmatprep.subr.bf16.mxu0 0
        %851 = vmatpush2.bf16.xpose.msra.mxu0 0
        %852 = vmatprep.subr.bf16.mxu0 0
        %853 = vmatpush2.bf16.xpose.msra.mxu0 0
        %854 = vmatprep.subr.bf16.mxu0 0
        %855 = vmatpush2.bf16.xpose.msra.mxu0 0
        %856 = vmatprep.subr.bf16.mxu0 0
        %857 = vmatpush2.bf16.xpose.msra.mxu0 0
        %858 = vmatprep.subr.bf16.mxu0 0
        %859 = vmatpush2.bf16.xpose.msra.mxu0 0
        %860 = vmatprep.subr.bf16.mxu0 0
        %861 = vmatpush2.bf16.xpose.msra.mxu0 0
        %862 = vmatprep.mubr.bf16.mxu0 0
        %863 = vmatmul.mubr.bf16.gmra.mxu0 %v828
        %v864 = vpop.f32.mrf.mxu0
        %v865 = vadd.f32 0.0, %v864
        %v866 = vpop.f32.mrf.mxu0
        %v867 = vpop.f32.mrf.mxu0
        %v868 = vpop.f32.mrf.mxu0
        %869 = vdwg.mxu0
        %v870 = vmul.f32 %v736, 0.35355338
        %v871 = vmul.f32 %v779, 0.35355338
        %v872 = vmul.f32 %v822, 0.35355338
        %v873 = vmul.f32 %v865, 0.35355338
        %v874 = vsel %vm697, %v870, -inf
        %875 = vmax.xlane.f32.xlu0 %v874
        %v876 = vpop.xlane.xlu0 %875
        %v877 = vsel %vm697, %v871, -inf
        %878 = vmax.xlane.f32.xlu0 %v877
        %v879 = vpop.xlane.xlu0 %878
        %v880 = vsel %vm697, %v872, -inf
        %881 = vmax.xlane.f32.xlu0 %v880
        %v882 = vpop.xlane.xlu0 %881
        %v883 = vsel %vm697, %v873, -inf
        %884 = vmax.xlane.f32.xlu0 %v883
        %v885 = vpop.xlane.xlu0 %884
        %v886 = vsub.f32 %v870, %v876
        %v887 = vsub.f32 %v871, %v879
        %v888 = vsub.f32 %v872, %v882
        %v889 = vsub.f32 %v873, %v885
        %v890 = vmul.f32 %v886, 1.442695
        %v891 = vpow.pop %v890
        %v892 = vmul.f32 %v887, 1.442695
        %v893 = vpow.pop %v892
        %v894 = vmul.f32 %v888, 1.442695
        %v895 = vpow.pop %v894
        %v896 = vmul.f32 %v889, 1.442695
        %v897 = vpow.pop %v896
        %v898 = vsel %vm697, %v891, 0.0
        %899 = vadd.xlane.f32.xlu0 %v898
        %v900 = vpop.xlane.xlu0 %899
        %v901 = vsel %vm697, %v893, 0.0
        %902 = vadd.xlane.f32.xlu0 %v901
        %v903 = vpop.xlane.xlu0 %902
        %v904 = vsel %vm697, %v895, 0.0
        %905 = vadd.xlane.f32.xlu0 %v904
        %v906 = vpop.xlane.xlu0 %905
        %v907 = vsel %vm697, %v897, 0.0
        %908 = vadd.xlane.f32.xlu0 %v907
        %v909 = vpop.xlane.xlu0 %908
        %v910 = vrcp.pop %v900
        %v911 = vrcp.pop %v903
        %v912 = vrcp.pop %v906
        %v913 = vrcp.pop %v909
        %v914 = vmul.f32 %v891, %v910
        %v915 = vmul.f32 %v893, %v911
        %v916 = vmul.f32 %v895, %v912
        %v917 = vmul.f32 %v897, %v913
        %v918 = vpack.c.bf16 %v914, %v914
        %v919 = vpack.c.bf16 %v915, %v915
        %v920 = vpack.c.bf16 %v916, %v916
        %v921 = vpack.c.bf16 %v917, %v917
        %v923 = vsel %vm697, %v918, 0
        %vm925 = vcmask 1043456
        %v926 = vsel %vm925, %v693, 0
        %928 = vmatprep.subr.bf16.mxu0 0
        %929 = vmatpush1.bf16.msra.mxu0 0
        %930 = vmatprep.subr.bf16.mxu0 0
        %931 = vmatpush1.bf16.msra.mxu0 0
        %932 = vmatprep.subr.bf16.mxu0 0
        %933 = vmatpush1.bf16.msra.mxu0 0
        %934 = vmatprep.subr.bf16.mxu0 0
        %935 = vmatpush1.bf16.msra.mxu0 0
        %936 = vmatprep.subr.bf16.mxu0 0
        %937 = vmatpush1.bf16.msra.mxu0 0
        %938 = vmatprep.subr.bf16.mxu0 0
        %939 = vmatpush1.bf16.msra.mxu0 0
        %940 = vmatprep.subr.bf16.mxu0 0
        %941 = vmatpush1.bf16.msra.mxu0 0
        %942 = vmatprep.subr.bf16.mxu0 0
        %943 = vmatpush1.bf16.msra.mxu0 %v926
        %944 = vmatprep.subr.bf16.mxu0 0
        %945 = vmatpush2.bf16.msra.mxu0 0
        %946 = vmatprep.subr.bf16.mxu0 0
        %947 = vmatpush2.bf16.msra.mxu0 0
        %948 = vmatprep.subr.bf16.mxu0 0
        %949 = vmatpush2.bf16.msra.mxu0 0
        %950 = vmatprep.subr.bf16.mxu0 0
        %951 = vmatpush2.bf16.msra.mxu0 0
        %952 = vmatprep.subr.bf16.mxu0 0
        %953 = vmatpush2.bf16.msra.mxu0 0
        %954 = vmatprep.subr.bf16.mxu0 0
        %955 = vmatpush2.bf16.msra.mxu0 0
        %956 = vmatprep.subr.bf16.mxu0 0
        %957 = vmatpush2.bf16.msra.mxu0 0
        %958 = vmatprep.subr.bf16.mxu0 0
        %959 = vmatpush2.bf16.msra.mxu0 0
        %960 = vmatprep.mubr.bf16.mxu0 0
        %961 = vmatmul.mubr.bf16.gmra.mxu0 %v923
        %v962 = vpop.f32.mrf.mxu0
        %v963 = vadd.f32 0.0, %v962
        %v964 = vpop.f32.mrf.mxu0
        %v965 = vpop.f32.mrf.mxu0
        %v966 = vpop.f32.mrf.mxu0
        %967 = vdwg.mxu0
        %v969 = vsel %vm697, %v919, 0
        %v971 = vsel %vm925, %v694, 0
        %973 = vmatprep.subr.bf16.mxu0 0
        %974 = vmatpush1.bf16.msra.mxu0 0
        %975 = vmatprep.subr.bf16.mxu0 0
        %976 = vmatpush1.bf16.msra.mxu0 0
        %977 = vmatprep.subr.bf16.mxu0 0
        %978 = vmatpush1.bf16.msra.mxu0 0
        %979 = vmatprep.subr.bf16.mxu0 0
        %980 = vmatpush1.bf16.msra.mxu0 0
        %981 = vmatprep.subr.bf16.mxu0 0
        %982 = vmatpush1.bf16.msra.mxu0 0
        %983 = vmatprep.subr.bf16.mxu0 0
        %984 = vmatpush1.bf16.msra.mxu0 0
        %985 = vmatprep.subr.bf16.mxu0 0
        %986 = vmatpush1.bf16.msra.mxu0 0
        %987 = vmatprep.subr.bf16.mxu0 0
        %988 = vmatpush1.bf16.msra.mxu0 %v971
        %989 = vmatprep.subr.bf16.mxu0 0
        %990 = vmatpush2.bf16.msra.mxu0 0
        %991 = vmatprep.subr.bf16.mxu0 0
        %992 = vmatpush2.bf16.msra.mxu0 0
        %993 = vmatprep.subr.bf16.mxu0 0
        %994 = vmatpush2.bf16.msra.mxu0 0
        %995 = vmatprep.subr.bf16.mxu0 0
        %996 = vmatpush2.bf16.msra.mxu0 0
        %997 = vmatprep.subr.bf16.mxu0 0
        %998 = vmatpush2.bf16.msra.mxu0 0
        %999 = vmatprep.subr.bf16.mxu0 0
        %1000 = vmatpush2.bf16.msra.mxu0 0
        %1001 = vmatprep.subr.bf16.mxu0 0
        %1002 = vmatpush2.bf16.msra.mxu0 0
        %1003 = vmatprep.subr.bf16.mxu0 0
        %1004 = vmatpush2.bf16.msra.mxu0 0
        %1005 = vmatprep.mubr.bf16.mxu0 0
        %1006 = vmatmul.mubr.bf16.gmra.mxu0 %v969
        %v1007 = vpop.f32.mrf.mxu0
        %v1008 = vadd.f32 0.0, %v1007
        %v1009 = vpop.f32.mrf.mxu0
        %v1010 = vpop.f32.mrf.mxu0
        %v1011 = vpop.f32.mrf.mxu0
        %1012 = vdwg.mxu0
        %v1014 = vsel %vm697, %v920, 0
        %v1016 = vsel %vm925, %v695, 0
        %1018 = vmatprep.subr.bf16.mxu0 0
        %1019 = vmatpush1.bf16.msra.mxu0 0
        %1020 = vmatprep.subr.bf16.mxu0 0
        %1021 = vmatpush1.bf16.msra.mxu0 0
        %1022 = vmatprep.subr.bf16.mxu0 0
        %1023 = vmatpush1.bf16.msra.mxu0 0
        %1024 = vmatprep.subr.bf16.mxu0 0
        %1025 = vmatpush1.bf16.msra.mxu0 0
        %1026 = vmatprep.subr.bf16.mxu0 0
        %1027 = vmatpush1.bf16.msra.mxu0 0
        %1028 = vmatprep.subr.bf16.mxu0 0
        %1029 = vmatpush1.bf16.msra.mxu0 0
        %1030 = vmatprep.subr.bf16.mxu0 0
        %1031 = vmatpush1.bf16.msra.mxu0 0
        %1032 = vmatprep.subr.bf16.mxu0 0
        %1033 = vmatpush1.bf16.msra.mxu0 %v1016
        %1034 = vmatprep.subr.bf16.mxu0 0
        %1035 = vmatpush2.bf16.msra.mxu0 0
        %1036 = vmatprep.subr.bf16.mxu0 0
        %1037 = vmatpush2.bf16.msra.mxu0 0
        %1038 = vmatprep.subr.bf16.mxu0 0
        %1039 = vmatpush2.bf16.msra.mxu0 0
        %1040 = vmatprep.subr.bf16.mxu0 0
        %1041 = vmatpush2.bf16.msra.mxu0 0
        %1042 = vmatprep.subr.bf16.mxu0 0
        %1043 = vmatpush2.bf16.msra.mxu0 0
        %1044 = vmatprep.subr.bf16.mxu0 0
        %1045 = vmatpush2.bf16.msra.mxu0 0
        %1046 = vmatprep.subr.bf16.mxu0 0
        %1047 = vmatpush2.bf16.msra.mxu0 0
        %1048 = vmatprep.subr.bf16.mxu0 0
        %1049 = vmatpush2.bf16.msra.mxu0 0
        %1050 = vmatprep.mubr.bf16.mxu0 0
        %1051 = vmatmul.mubr.bf16.gmra.mxu0 %v1014
        %v1052 = vpop.f32.mrf.mxu0
        %v1053 = vadd.f32 0.0, %v1052
        %v1054 = vpop.f32.mrf.mxu0
        %v1055 = vpop.f32.mrf.mxu0
        %v1056 = vpop.f32.mrf.mxu0
        %1057 = vdwg.mxu0
        %v1059 = vsel %vm697, %v921, 0
        %v1061 = vsel %vm925, %v696, 0
        %1063 = vmatprep.subr.bf16.mxu0 0
        %1064 = vmatpush1.bf16.msra.mxu0 0
        %1065 = vmatprep.subr.bf16.mxu0 0
        %1066 = vmatpush1.bf16.msra.mxu0 0
        %1067 = vmatprep.subr.bf16.mxu0 0
        %1068 = vmatpush1.bf16.msra.mxu0 0
        %1069 = vmatprep.subr.bf16.mxu0 0
        %1070 = vmatpush1.bf16.msra.mxu0 0
        %1071 = vmatprep.subr.bf16.mxu0 0
        %1072 = vmatpush1.bf16.msra.mxu0 0
        %1073 = vmatprep.subr.bf16.mxu0 0
        %1074 = vmatpush1.bf16.msra.mxu0 0
        %1075 = vmatprep.subr.bf16.mxu0 0
        %1076 = vmatpush1.bf16.msra.mxu0 0
        %1077 = vmatprep.subr.bf16.mxu0 0
        %1078 = vmatpush1.bf16.msra.mxu0 %v1061
        %1079 = vmatprep.subr.bf16.mxu0 0
        %1080 = vmatpush2.bf16.msra.mxu0 0
        %1081 = vmatprep.subr.bf16.mxu0 0
        %1082 = vmatpush2.bf16.msra.mxu0 0
        %1083 = vmatprep.subr.bf16.mxu0 0
        %1084 = vmatpush2.bf16.msra.mxu0 0
        %1085 = vmatprep.subr.bf16.mxu0 0
        %1086 = vmatpush2.bf16.msra.mxu0 0
        %1087 = vmatprep.subr.bf16.mxu0 0
        %1088 = vmatpush2.bf16.msra.mxu0 0
        %1089 = vmatprep.subr.bf16.mxu0 0
        %1090 = vmatpush2.bf16.msra.mxu0 0
        %1091 = vmatprep.subr.bf16.mxu0 0
        %1092 = vmatpush2.bf16.msra.mxu0 0
        %1093 = vmatprep.subr.bf16.mxu0 0
        %1094 = vmatpush2.bf16.msra.mxu0 0
        %1095 = vmatprep.mubr.bf16.mxu0 0
        %1096 = vmatmul.mubr.bf16.gmra.mxu0 %v1059
        %v1097 = vpop.f32.mrf.mxu0
        %v1098 = vadd.f32 0.0, %v1097
        %v1099 = vpop.f32.mrf.mxu0
        %v1100 = vpop.f32.mrf.mxu0
        %v1101 = vpop.f32.mrf.mxu0
        %1102 = vdwg.mxu0
        %1104 = vrot.lane.b32.xlu0 %v1008, 8
        %v1105 = vpop.permute.xlu0 %1104
        %1108 = vrot.lane.b32.xlu0 %v1053, 16
        %v1109 = vpop.permute.xlu0 %1108
        %1112 = vrot.lane.b32.xlu0 %v1098, 24
        %v1113 = vpop.permute.xlu0 %1112
        %v1115 = vsel %vm697, %v963, %v1105
        %vm1116 = vcmask 130048
        %v1117 = vsel %vm1116, %v1115, %v1109
        %vm1118 = vcmask 195584
        %v1119 = vsel %vm1118, %v1117, %v1113
        %v1120 = vadd.f32 %v614, %v1119
        %v1121 = vld [vmem:[%s580] sm:$0x1]
        %v1122 = vld [vmem:[%s583] sm:$0x1]
        %v1123 = vsel %vm639, %v1120, 0.0
        %1124 = vadd.xlane.f32.xlu0 %v1123
        %v1125 = vpop.xlane.xlu0 %1124
        %v1126 = vrcp.pop 32.0
        %v1127 = vmul.f32 %v1125, %v1126
        %v1128 = vsub.f32 %v1120, %v1127
        %v1129 = vmul.f32 %v1128, %v1128
        %v1130 = vsel %vm639, %v1129, 0.0
        %1131 = vadd.xlane.f32.xlu0 %v1130
        %v1132 = vpop.xlane.xlu0 %1131
        %v1133 = vmul.f32 %v1132, 0.032258064
        %v1134 = vrsqrt.pop %v1133
        %v1135 = vmul.f32 %v1133, %v1134
        %vm1136 = vcmp.eq.f32.partialorder %v1133, inf
        %v1137 = vsel %vm1136, %v1133, %v1135
        %vm1138 = vcmp.eq.f32.partialorder %v1133, 0.0
        %v1139 = vand.u32 %v1133, 2147483648
        %v1140 = vsel %vm1138, %v1139, %v1137
        %v1141 = vadd.f32 %v1140, 1e-06
        %v1142 = vrcp.pop %v1141
        %v1143 = vmul.f32 %v1128, %v1142
        %v1145 = vlaneseq
        %v1146 = vshrl.u32 %v1145, 7
        %v1147 = vsub.s32 0, %v1146
        %v1148 = vrot.slane %v1121, %v1147
        %v1150 = vmul.f32 %v1148, %v1143
        %v1152 = vlaneseq
        %v1153 = vshrl.u32 %v1152, 7
        %v1154 = vsub.s32 0, %v1153
        %v1155 = vrot.slane %v1122, %v1154
        %v1157 = vadd.f32 %v1150, %v1155
        %v1158 = vpack.c.bf16 %v1157, %v1157
        %v1159 = vld [vmem:[%s588] sm:$0xf]
        %v1160 = vld [vmem:[%s588 + $0x4] sm:$0xf]
        %v1161 = vld [vmem:[%s588 + $0x8] sm:$0xf]
        %v1162 = vld [vmem:[%s588 + $0xc] sm:$0xf]
        %v1163 = vld [vmem:[%s591] sm:$0x1]
        %v1165 = vlaneseq
        %v1166 = vshrl.u32 %v1165, 7
        %v1167 = vsub.s32 0, %v1166
        %v1168 = vrot.slane %v1163, %v1167
        %v1174 = vunpack.c.l.b16 %v1159
        %v1175 = vunpack.c.l.b16 %v1160
        %v1176 = vunpack.c.l.b16 %v1161
        %v1177 = vunpack.c.l.b16 %v1162
        %v1178 = vpack.c.b16 %v1175, %v1174
        %v1179 = vpack.c.b16 %v1177, %v1176
        %v1183 = vsel %vm639, %v1158, 0
        %1185 = vmatprep.subr.bf16.mxu0 0
        %1186 = vmatpush1.bf16.msra.mxu0 0
        %1187 = vmatprep.subr.bf16.mxu0 0
        %1188 = vmatpush1.bf16.msra.mxu0 0
        %1189 = vmatprep.subr.bf16.mxu0 0
        %1190 = vmatpush1.bf16.msra.mxu0 0
        %1191 = vmatprep.subr.bf16.mxu0 0
        %1192 = vmatpush1.bf16.msra.mxu0 0
        %1193 = vmatprep.subr.bf16.mxu0 0
        %1194 = vmatpush1.bf16.msra.mxu0 0
        %1195 = vmatprep.subr.bf16.mxu0 0
        %1196 = vmatpush1.bf16.msra.mxu0 0
        %1197 = vmatprep.subr.bf16.mxu0 0
        %1198 = vmatpush1.bf16.msra.mxu0 %v1179
        %1199 = vmatprep.subr.bf16.mxu0 0
        %1200 = vmatpush1.bf16.msra.mxu0 %v1178
        %1201 = vmatprep.subr.bf16.mxu0 0
        %1202 = vmatpush2.bf16.msra.mxu0 0
        %1203 = vmatprep.subr.bf16.mxu0 0
        %1204 = vmatpush2.bf16.msra.mxu0 0
        %1205 = vmatprep.subr.bf16.mxu0 0
        %1206 = vmatpush2.bf16.msra.mxu0 0
        %1207 = vmatprep.subr.bf16.mxu0 0
        %1208 = vmatpush2.bf16.msra.mxu0 0
        %1209 = vmatprep.subr.bf16.mxu0 0
        %1210 = vmatpush2.bf16.msra.mxu0 0
        %1211 = vmatprep.subr.bf16.mxu0 0
        %1212 = vmatpush2.bf16.msra.mxu0 0
        %1213 = vmatprep.subr.bf16.mxu0 0
        %1214 = vmatpush2.bf16.msra.mxu0 0
        %1215 = vmatprep.subr.bf16.mxu0 0
        %1216 = vmatpush2.bf16.msra.mxu0 0
        %1217 = vmatprep.mubr.bf16.mxu0 0
        %1218 = vmatmul.mubr.bf16.gmra.mxu0 %v1183
        %v1219 = vpop.f32.mrf.mxu0
        %v1220 = vadd.f32 %v1168, %v1219
        %v1221 = vpop.f32.mrf.mxu0
        %v1222 = vpop.f32.mrf.mxu0
        %v1223 = vpop.f32.mrf.mxu0
        %1224 = vdwg.mxu0
        %v1225 = vmax.f32 %v1220, 0.0
        %v1226 = vpack.c.bf16 %v1225, %v1225
        %v1227 = vld [vmem:[%s596] sm:$0xf]
        %v1228 = vld [vmem:[%s596 + $0x4] sm:$0xf]
        %v1229 = vld [vmem:[%s596 + $0x8] sm:$0xf]
        %v1230 = vld [vmem:[%s596 + $0xc] sm:$0xf]
        %v1231 = vld [vmem:[%s596 + $0x10] sm:$0xf]
        %v1232 = vld [vmem:[%s596 + $0x14] sm:$0xf]
        %v1233 = vld [vmem:[%s596 + $0x18] sm:$0xf]
        %v1234 = vld [vmem:[%s596 + $0x1c] sm:$0xf]
        %v1235 = vld [vmem:[%s599] sm:$0x1]
        %v1237 = vlaneseq
        %v1238 = vshrl.u32 %v1237, 7
        %v1239 = vsub.s32 0, %v1238
        %v1240 = vrot.slane %v1235, %v1239
        %v1250 = vunpack.c.l.b16 %v1227
        %v1251 = vunpack.c.l.b16 %v1228
        %v1252 = vunpack.c.l.b16 %v1229
        %v1253 = vunpack.c.l.b16 %v1230
        %v1254 = vunpack.c.l.b16 %v1231
        %v1255 = vunpack.c.l.b16 %v1232
        %v1256 = vunpack.c.l.b16 %v1233
        %v1257 = vunpack.c.l.b16 %v1234
        %v1258 = vpack.c.b16 %v1251, %v1250
        %v1259 = vpack.c.b16 %v1253, %v1252
        %v1260 = vpack.c.b16 %v1255, %v1254
        %v1261 = vpack.c.b16 %v1257, %v1256
        %vm1266 = vcmask 523264
        %v1268 = vsel %vm1266, %v1226, 0
        %1270 = vmatprep.subr.bf16.mxu0 0
        %1271 = vmatpush1.bf16.msra.mxu0 0
        %1272 = vmatprep.subr.bf16.mxu0 0
        %1273 = vmatpush1.bf16.msra.mxu0 0
        %1274 = vmatprep.subr.bf16.mxu0 0
        %1275 = vmatpush1.bf16.msra.mxu0 0
        %1276 = vmatprep.subr.bf16.mxu0 0
        %1277 = vmatpush1.bf16.msra.mxu0 0
        %1278 = vmatprep.subr.bf16.mxu0 0
        %1279 = vmatpush1.bf16.msra.mxu0 %v1261
        %1280 = vmatprep.subr.bf16.mxu0 0
        %1281 = vmatpush1.bf16.msra.mxu0 %v1260
        %1282 = vmatprep.subr.bf16.mxu0 0
        %1283 = vmatpush1.bf16.msra.mxu0 %v1259
        %1284 = vmatprep.subr.bf16.mxu0 0
        %1285 = vmatpush1.bf16.msra.mxu0 %v1258
        %1286 = vmatprep.subr.bf16.mxu0 0
        %1287 = vmatpush2.bf16.msra.mxu0 0
        %1288 = vmatprep.subr.bf16.mxu0 0
        %1289 = vmatpush2.bf16.msra.mxu0 0
        %1290 = vmatprep.subr.bf16.mxu0 0
        %1291 = vmatpush2.bf16.msra.mxu0 0
        %1292 = vmatprep.subr.bf16.mxu0 0
        %1293 = vmatpush2.bf16.msra.mxu0 0
        %1294 = vmatprep.subr.bf16.mxu0 0
        %1295 = vmatpush2.bf16.msra.mxu0 0
        %1296 = vmatprep.subr.bf16.mxu0 0
        %1297 = vmatpush2.bf16.msra.mxu0 0
        %1298 = vmatprep.subr.bf16.mxu0 0
        %1299 = vmatpush2.bf16.msra.mxu0 0
        %1300 = vmatprep.subr.bf16.mxu0 0
        %1301 = vmatpush2.bf16.msra.mxu0 0
        %1302 = vmatprep.mubr.bf16.mxu0 0
        %1303 = vmatmul.mubr.bf16.gmra.mxu0 %v1268
        %v1304 = vpop.f32.mrf.mxu0
        %v1305 = vadd.f32 %v1240, %v1304
        %v1306 = vpop.f32.mrf.mxu0
        %v1307 = vpop.f32.mrf.mxu0
        %v1308 = vpop.f32.mrf.mxu0
        %1309 = vdwg.mxu0
        %v1310 = vadd.f32 %v1157, %v1305
        %v1311 = vld [vmem:[%s602] sm:$0x1]
        %v1312 = vld [vmem:[%s605] sm:$0x1]
        %v1313 = vsel %vm639, %v1310, 0.0
        %1314 = vadd.xlane.f32.xlu0 %v1313
        %v1315 = vpop.xlane.xlu0 %1314
        %v1316 = vmul.f32 %v1315, %v1126
        %v1317 = vsub.f32 %v1310, %v1316
        %v1318 = vmul.f32 %v1317, %v1317
        %v1319 = vsel %vm639, %v1318, 0.0
        %1320 = vadd.xlane.f32.xlu0 %v1319
        %v1321 = vpop.xlane.xlu0 %1320
        %v1322 = vmul.f32 %v1321, 0.032258064
        %v1323 = vrsqrt.pop %v1322
        %v1324 = vmul.f32 %v1322, %v1323
        %vm1325 = vcmp.eq.f32.partialorder %v1322, inf
        %v1326 = vsel %vm1325, %v1322, %v1324
        %vm1327 = vcmp.eq.f32.partialorder %v1322, 0.0
        %v1328 = vand.u32 %v1322, 2147483648
        %v1329 = vsel %vm1327, %v1328, %v1326
        %v1330 = vadd.f32 %v1329, 1e-06
        %v1331 = vrcp.pop %v1330
        %v1332 = vmul.f32 %v1317, %v1331
        %v1334 = vlaneseq
        %v1335 = vshrl.u32 %v1334, 7
        %v1336 = vsub.s32 0, %v1335
        %v1337 = vrot.slane %v1311, %v1336
        %v1339 = vmul.f32 %v1337, %v1332
        %v1341 = vlaneseq
        %v1342 = vshrl.u32 %v1341, 7
        %v1343 = vsub.s32 0, %v1342
        %v1344 = vrot.slane %v1312, %v1343
        %v1346 = vadd.f32 %v1339, %v1344
        %1347 = vst.msk [vmem:[#allocation2] sm:$0xff] %vm639, %v1346
        %p1348 = scmp.eq.s32.totalorder %s32, 1
        // Predicated region
        $region77: #{transformer_ec_forward.1} parent=71 // pred_check
          %p1349 = pneg %p1348
        $region78: #{transformer_ec_forward.1} parent=71 // pred_check_branch
          %1351 = sbr.rel (%p1349) target = $region80
        $region79: #{transformer_ec_forward.1} parent=71 // pred_region
          %v1352 = vpack.c.bf16 %v1346, %v1346
          %v1353 = vld [vmem:[%s11] sm:$0xf]
          %v1354 = vld [vmem:[%s11 + $0x4] sm:$0xf]
          %v1355 = vld [vmem:[%s11 + $0x8] sm:$0xf]
          %v1356 = vld [vmem:[%s11 + $0xc] sm:$0xf]
          %v1357 = vld [vmem:[%s12] sm:$0x1]
          %v1359 = vlaneseq
          %v1360 = vshrl.u32 %v1359, 7
          %v1361 = vsub.s32 0, %v1360
          %v1362 = vrot.slane %v1357, %v1361
          %v1368 = vunpack.c.l.b16 %v1353
          %v1369 = vunpack.c.l.b16 %v1354
          %v1370 = vunpack.c.l.b16 %v1355
          %v1371 = vunpack.c.l.b16 %v1356
          %v1372 = vpack.c.b16 %v1369, %v1368
          %v1373 = vpack.c.b16 %v1371, %v1370
          %v1377 = vsel %vm639, %v1352, 0
          %1379 = vmatprep.subr.bf16.mxu0 0
          %1380 = vmatpush1.bf16.msra.mxu0 0
          %1381 = vmatprep.subr.bf16.mxu0 0
          %1382 = vmatpush1.bf16.msra.mxu0 0
          %1383 = vmatprep.subr.bf16.mxu0 0
          %1384 = vmatpush1.bf16.msra.mxu0 0
          %1385 = vmatprep.subr.bf16.mxu0 0
          %1386 = vmatpush1.bf16.msra.mxu0 0
          %1387 = vmatprep.subr.bf16.mxu0 0
          %1388 = vmatpush1.bf16.msra.mxu0 0
          %1389 = vmatprep.subr.bf16.mxu0 0
          %1390 = vmatpush1.bf16.msra.mxu0 0
          %1391 = vmatprep.subr.bf16.mxu0 0
          %1392 = vmatpush1.bf16.msra.mxu0 %v1373
          %1393 = vmatprep.subr.bf16.mxu0 0
          %1394 = vmatpush1.bf16.msra.mxu0 %v1372
          %1395 = vmatprep.subr.bf16.mxu0 0
          %1396 = vmatpush2.bf16.msra.mxu0 0
          %1397 = vmatprep.subr.bf16.mxu0 0
          %1398 = vmatpush2.bf16.msra.mxu0 0
          %1399 = vmatprep.subr.bf16.mxu0 0
          %1400 = vmatpush2.bf16.msra.mxu0 0
          %1401 = vmatprep.subr.bf16.mxu0 0
          %1402 = vmatpush2.bf16.msra.mxu0 0
          %1403 = vmatprep.subr.bf16.mxu0 0
          %1404 = vmatpush2.bf16.msra.mxu0 0
          %1405 = vmatprep.subr.bf16.mxu0 0
          %1406 = vmatpush2.bf16.msra.mxu0 0
          %1407 = vmatprep.subr.bf16.mxu0 0
          %1408 = vmatpush2.bf16.msra.mxu0 0
          %1409 = vmatprep.subr.bf16.mxu0 0
          %1410 = vmatpush2.bf16.msra.mxu0 0
          %1411 = vmatprep.mubr.bf16.mxu0 0
          %1412 = vmatmul.mubr.bf16.gmra.mxu0 %v1377
          %v1413 = vpop.f32.mrf.mxu0
          %v1414 = vadd.f32 %v1362, %v1413
          %v1415 = vpop.f32.mrf.mxu0
          %v1416 = vpop.f32.mrf.mxu0
          %v1417 = vpop.f32.mrf.mxu0
          %1418 = vdwg.mxu0
          %1419 = vst [vmem:[%s565] sm:$0xff] %v1414
        $region80: #{transformer_ec_forward.1} parent=71 // pred_fallthru
          _
        %s1420 = sand.u32 %s375, 1
        %s1421 = scalar_lea.sflag [#allocation4], %s1420
        %s1422 = sand.u32 %s375, 1
        %s1423 = smul.addr %s1422, 8
        %s1424 = scalar_lea.vmem [#allocation3], %s1423
        // Predicated region
        $region81: #{transformer_ec_forward.1} parent=71 // pred_check
          %p1425 = pneg %p385
        $region82: #{transformer_ec_forward.1} parent=71 // pred_check_branch
          %1427 = sbr.rel (%p1425) target = $region84
        $region83: #{transformer_ec_forward.1} parent=71 // pred_region
          %s1429 = ssub.s32 128, 128
          %1430 = vsyncadd %s1421, %s1429
          %s1431 = smul.addr %s31, 128
          %s1432 = scalar_lea.hbm %s13, %s1431
          %s1434 = sshll.u32 %s1424, 4
          %s1435 = int_to_ptr.vmem [resolvable:$true] %s1434
          %1437 = dma.vmem_to_hbm [thread:$0]  %s1435, 128, %s1432, %s1421
        $region84: #{transformer_ec_forward.1} parent=71 // pred_fallthru
          _
      $region72: #{transformer_ec_forward.1} parent=5 // pred_fallthru
        _
      %p1438 = scmp.le.s32.totalorder 2, %s22
      // Predicated region
      $region85: #{transformer_ec_forward.1} parent=5 // pred_check
        %p1439 = pneg %p1438
      $region86: #{transformer_ec_forward.1} parent=5 // pred_check_branch
        %1441 = sbr.rel (%p1439) target = $region88
      $region87: #{transformer_ec_forward.1} parent=5 // pred_region
        %s1442 = ssub.s32 %s22, 2
        // Predicated region
        $region89: #{transformer_ec_forward.1} parent=87 // pred_check
          %p1443 = pneg %p391
        $region90: #{transformer_ec_forward.1} parent=87 // pred_check_branch
          %1445 = sbr.rel (%p1443) target = $region92
        $region91: #{transformer_ec_forward.1} parent=87 // pred_region
          %s1446 = sand.u32 %s376, 1
          %s1447 = scalar_lea.sflag [#allocation4], %s1446
          %s1448 = sand.u32 %s376, 1
          %s1449 = smul.addr %s1448, 8
          %s1450 = scalar_lea.vmem [#allocation3], %s1449
          %1451 = dma.done %s1447, 128
        $region92: #{transformer_ec_forward.1} parent=87 // pred_fallthru
          _
      $region88: #{transformer_ec_forward.1} parent=5 // pred_fallthru
        _
    $region6: #{transformer_ec_forward.1} parent=1 // loop_footer
      %s26 = sadd.s32 1, %s22
    $region7: #{transformer_ec_forward.1} parent=1 // loop_footer_branch
      %21 = sbr.rel target = $region3
    $region8: #{transformer_ec_forward.1} parent=1 // loop_exit
      _
    %1452 = vsyncpa [#allocation4], 1
    %s1453 = scalar_lea.sflag [#allocation4], 1
    %1454 = vsyncpa %s1453, 1

</llo_original>
